<compile_context>
chip_gen: v5e
topology: v5e:2x2
jax: 0.10.0
libtpu: 0.0.40
codegen_flags: <defaults>
</compile_context>

<pallas_src>
from functools import partial

import jax
import jax.numpy as jnp
from jax.experimental import pallas as pl
from jax.experimental.pallas import tpu as pltpu


# --------------------------------------------------------------------------- helpers
def _round_up(x, m):
    return ((x + m - 1) // m) * m


def _pad_to(x, axis, new_size, value=0.0):
    if x.shape[axis] == new_size:
        return x
    pad = [(0, 0)] * x.ndim
    pad[axis] = (0, new_size - x.shape[axis])
    return jnp.pad(x, pad, constant_values=value)


def _pad_gate_cols(w, H, Hp):
    """(..., 4H) -> (..., 4Hp): each PyTorch gate chunk (i,f,g,o) zero-padded to Hp
    so in-kernel slices at k*Hp stay lane-aligned."""
    parts = [_pad_to(w[..., k * H:(k + 1) * H], -1, Hp) for k in range(4)]
    return jnp.concatenate(parts, axis=-1)


def _choose_batch_tiling(B):
    """(padded batch, batch tile).  Large batches use 128-row tiles (full MXU rows);
    mid-size batches split in two so the parallel grid axis can shard across v7x's
    two TensorCores."""
    Bp = _round_up(B, 8)
    if Bp > 128:
        Bp = _round_up(Bp, 128)
        return Bp, 128
    if Bp >= 16 and (Bp // 2) % 8 == 0:
        return Bp, Bp // 2
    return Bp, Bp


def _vmem_limit_bytes(bt, Lp, Dp, Ep, Hp, Vp):
    """Explicit scoped-VMEM request computed from the actual block sizes + headroom.
    Floor = 32 MiB (never below any generation's default), cap = 64 MiB (v7x)."""
    w = 2 * ((Hp + Dp) * Hp + (Ep + Hp + Dp) * 4 * Hp + Hp * Vp + Vp * Ep)  # bf16
    b = 4 * (6 * Hp + Vp)
    act = 4 * (bt * Ep + bt * Lp * Dp + bt * Vp)
    scratch = 4 * (bt * (Ep + Hp) + bt * Hp)
    interm = 4 * (bt * Lp * Hp + bt * 4 * Hp)
    total = 2 * (w + b + act) + scratch + interm                  # 2x double-buffering
    return int(min(64 * 2**20, max(32 * 2**20, 2 * total)))


# --------------------------------------------------------------------------- kernel
def nre_fused_kernel(emb_ref, enc_ref, wattn_ref, wgates_ref, wfc_ref,
                     embtab_ref, bias_ref, out_ref, eh_sc, c_sc,
                     *, true_L, teacher_forcing):
    f32, bf16 = jnp.float32, jnp.bfloat16
    tt = pl.program_id(1)                        # time step (innermost, "arbitrary")
    bt, Lp, Dp = enc_ref.shape
    Hp = wattn_ref.shape[1]
    Vp = wfc_ref.shape[1]
    Ep = eh_sc.shape[1] - Hp

    # packed f32 biases: [attn_b | v | gate_b | fc_b (padded vocab lanes = -1e30)]
    ba = bias_ref[:, 0:Hp]                       # (1, Hp)
    v_row = bias_ref[:, Hp:2 * Hp]               # (1, Hp)
    bg = bias_ref[:, 2 * Hp:6 * Hp]              # (1, 4Hp)
    bfc = bias_ref[:, 6 * Hp:]                   # (1, Vp)

    # ---- recurrent state init (once per batch tile) ----
    @pl.when(tt == 0)
    def _init():
        eh_sc[:, Ep:] = jnp.zeros((bt, Hp), f32)          # h = 0
        c_sc[...] = jnp.zeros_like(c_sc)                  # c = 0
        if not teacher_forcing:
            eh_sc[:, :Ep] = emb_ref[0]                    # embedding of trg[0]

    if teacher_forcing:
        eh_sc[:, :Ep] = emb_ref[0]                        # embedding of trg[t-1]

    enc = enc_ref[...]                                    # (bt, Lp, Dp) f32
    h = eh_sc[:, Ep:]                                     # (bt, Hp)

    # ---- attention: energy = tanh([h; enc] @ W_attn^T + b_attn) ----
    hid_part = jnp.dot(h.astype(bf16), wattn_ref[:Hp, :],
                       preferred_element_type=f32)                        # (bt, Hp)
    enc_part = jnp.dot(enc.reshape(bt * Lp, Dp).astype(bf16), wattn_ref[Hp:, :],
                       preferred_element_type=f32).reshape(bt, Lp, Hp)
    energy = jnp.tanh(enc_part + hid_part[:, None, :] + ba[None])         # (bt,Lp,Hp)

    # scores via VPU multiply + lane reduce (avoids a degenerate N=1 MXU matmul)
    scores = jnp.sum(energy * v_row[None], axis=-1)                       # (bt, Lp)
    if true_L != Lp:                                 # mask zero-padded source rows
        pos = jax.lax.broadcasted_iota(jnp.int32, (bt, Lp), 1)
        scores = jnp.where(pos < true_L, scores, -1e30)
    m = jnp.max(scores, axis=1, keepdims=True)
    e = jnp.exp(scores - m)
    # exact divide: in-loop argmax feedback is sensitive to near-tie perturbations
    a = e / jnp.sum(e, axis=1, keepdims=True)
    weighted = jnp.sum(a[:, :, None] * enc, axis=1)                       # (bt, Dp)

    # ---- LSTM: input projection folded offline; emb+h matmuls merged ----
    gates = (jnp.dot(eh_sc[...].astype(bf16), wgates_ref[:Ep + Hp, :],
                     preferred_element_type=f32)
             + jnp.dot(weighted.astype(bf16), wgates_ref[Ep + Hp:, :],
                       preferred_element_type=f32)
             + bg)                                                        # (bt, 4Hp)
    i_g = jax.nn.sigmoid(gates[:, 0:Hp])
    f_g = jax.nn.sigmoid(gates[:, Hp:2 * Hp])
    g_g = jnp.tanh(gates[:, 2 * Hp:3 * Hp])
    o_g = jax.nn.sigmoid(gates[:, 3 * Hp:])
    c_new = f_g * c_sc[...] + i_g * g_g
    h_new = o_g * jnp.tanh(c_new)

    # ---- output projection ----
    pred = jnp.dot(h_new.astype(bf16), wfc_ref[...],
                   preferred_element_type=f32) + bfc                      # (bt, Vp)

    out_ref[0] = pred
    eh_sc[:, Ep:] = h_new
    c_sc[...] = c_new

    if not teacher_forcing:
        # in-kernel argmax feedback: first-max one-hot, embedding gather via MXU
        colf = jax.lax.broadcasted_iota(jnp.int32, (bt, Vp), 1).astype(f32)
        mx = jnp.max(pred, axis=1, keepdims=True)
        idx = jnp.min(jnp.where(pred == mx, colf, float(Vp)), axis=1, keepdims=True)
        onehot = (colf == idx).astype(bf16)
        eh_sc[:, :Ep] = jnp.dot(onehot, embtab_ref[...],
                                preferred_element_type=f32)               # (bt, Ep)


# --------------------------------------------------------------------------- params
def init_params(key, embed_dim, encoder_dim, hid_dim, output_dim):
    keys = jax.random.split(key, 12)
    s = 0.1
    f32 = jnp.float32
    return {
        "embedding": jax.random.normal(keys[0], (output_dim, embed_dim), f32) * s,
        "attn_w":    jax.random.normal(keys[1], (hid_dim, hid_dim + encoder_dim), f32) * s,
        "attn_b":    jax.random.normal(keys[2], (hid_dim,), f32) * s,
        "v_w":       jax.random.normal(keys[3], (1, hid_dim), f32) * s,
        "in_w":      jax.random.normal(keys[4], (embed_dim, embed_dim + encoder_dim), f32) * s,
        "in_b":      jax.random.normal(keys[5], (embed_dim,), f32) * s,
        "w_ih":      jax.random.normal(keys[6], (4 * hid_dim, embed_dim), f32) * s,
        "w_hh":      jax.random.normal(keys[7], (4 * hid_dim, hid_dim), f32) * s,
        "b_ih":      jax.random.normal(keys[8], (4 * hid_dim,), f32) * s,
        "b_hh":      jax.random.normal(keys[9], (4 * hid_dim,), f32) * s,
        "fc_w":      jax.random.normal(keys[10], (output_dim, hid_dim), f32) * s,
        "fc_b":      jax.random.normal(keys[11], (output_dim,), f32) * s,
    }


def prepare_params(params, embed_dim, encoder_dim, hid_dim, output_dim, lane=128):
    """One-time weight re-layout: transpose to (in, out), fold the LSTM input
    projection into the gate matmul (in f32, then cast), reorder gate rows to
    [W1; Whh; W2], zero-pad to 128-lane multiples, cast matmul weights to bf16
    and pack biases into one f32 slab."""
    E, D, H, V = embed_dim, encoder_dim, hid_dim, output_dim
    Ep, Dp, Hp, Vp = (_round_up(x, lane) for x in (E, D, H, V))
    bf16 = jnp.bfloat16

    wah = params["attn_w"][:, :H].T            # (H, H)   hidden part
    wae = params["attn_w"][:, H:].T            # (D, H)   encoder part
    wie = params["in_w"][:, :E].T              # (E, E)   embedding part
    wia = params["in_w"][:, E:].T              # (D, E)   attn-encoding part
    wih = params["w_ih"].T                     # (E, 4H)
    whh = params["w_hh"].T                     # (H, 4H)
    wfc = params["fc_w"].T                     # (H, V)

    # Fold the input projection into the gate matmul (f32).
    W1 = wie @ wih                             # (E, 4H)
    W2 = wia @ wih                             # (D, 4H)
    bg = params["in_b"] @ wih + params["b_ih"] + params["b_hh"]     # (4H,)

    w_attn = jnp.concatenate([
        _pad_to(_pad_to(wah, 0, Hp), 1, Hp),
        _pad_to(_pad_to(wae, 0, Dp), 1, Hp)], axis=0).astype(bf16)  # (Hp+Dp, Hp)

    # Row order [W1 ; Whh ; W2] so the [emb | h] scratch slab uses one fused matmul.
    w_gates = jnp.concatenate([
        _pad_to(_pad_gate_cols(W1, H, Hp), 0, Ep),
        _pad_to(_pad_gate_cols(whh, H, Hp), 0, Hp),
        _pad_to(_pad_gate_cols(W2, H, Hp), 0, Dp)], axis=0).astype(bf16)  # (Ep+Hp+Dp, 4Hp)

    w_fc = _pad_to(_pad_to(wfc, 0, Hp), 1, Vp).astype(bf16)         # (Hp, Vp)

    # fc_b padded vocab lanes get -1e30 so the in-kernel argmax never picks them.
    bias = jnp.concatenate([
        _pad_to(params["attn_b"], 0, Hp),
        _pad_to(params["v_w"][0], 0, Hp),
        _pad_gate_cols(bg, H, Hp),
        _pad_to(params["fc_b"], 0, Vp, value=-1e30)], axis=0)[None, :]  # (1, 6Hp+Vp)
    bias = bias.astype(jnp.float32)

    embedding = _pad_to(params["embedding"], 1, Ep)                 # (V, Ep)  f32
    emb_table = _pad_to(embedding, 0, Vp).astype(bf16)              # (Vp, Ep) bf16

    return {"embedding": embedding, "emb_table": emb_table,
            "w_attn": w_attn, "w_gates": w_gates, "w_fc": w_fc, "bias": bias,
            "dims": {"E": E, "D": D, "H": H, "V": V,
                     "Ep": Ep, "Dp": Dp, "Hp": Hp, "Vp": Vp}}


def prepare_encoder_out(encoder_out, prep):
    """One-time (per sequence) pad: feature dim -> Dp, length -> multiple of 8."""
    enc = _pad_to(encoder_out, 2, prep["dims"]["Dp"])
    return _pad_to(enc, 1, _round_up(encoder_out.shape[1], 8))


# --------------------------------------------------------------------------- forward
@partial(jax.jit, static_argnames=("teacher_forcing", "true_L"))
def _nre_forward_impl(trg_t, enc_padded, embedding_f32, w_attn, w_gates, w_fc,
                      emb_table, bias, *, teacher_forcing, true_L):
    T, B = trg_t.shape
    _, Lp, Dp = enc_padded.shape
    Ep = embedding_f32.shape[1]
    Hp = w_attn.shape[1]
    Vp = w_fc.shape[1]
    steps = T - 1

    # Teacher-forced embeddings are gathered once up-front (one XLA gather) and
    # streamed per step; the free-running path only needs the first token's row.
    if teacher_forcing:
        emb_seq = embedding_f32[trg_t[:steps]]                  # (steps, B, Ep)
        emb_map = lambda i, t: (t, i, 0)
    else:
        emb_seq = embedding_f32[trg_t[0]][None]                 # (1, B, Ep)
        emb_map = lambda i, t: (0, i, 0)

    Bp, bt = _choose_batch_tiling(B)
    if Bp != B:
        emb_seq = _pad_to(emb_seq, 1, Bp)
        enc_padded = _pad_to(enc_padded, 0, Bp)

    kernel = partial(nre_fused_kernel, true_L=true_L, teacher_forcing=teacher_forcing)

    out = pl.pallas_call(
        kernel,
        out_shape=jax.ShapeDtypeStruct((steps, Bp, Vp), jnp.float32),
        grid_spec=pltpu.PrefetchScalarGridSpec(
            num_scalar_prefetch=0,
            grid=(Bp // bt, steps),
            in_specs=[
                pl.BlockSpec((1, bt, Ep), emb_map),
                pl.BlockSpec((bt, Lp, Dp), lambda i, t: (i, 0, 0)),
                pl.BlockSpec((Hp + Dp, Hp), lambda i, t: (0, 0)),
                pl.BlockSpec((Ep + Hp + Dp, 4 * Hp), lambda i, t: (0, 0)),
                pl.BlockSpec((Hp, Vp), lambda i, t: (0, 0)),
                pl.BlockSpec((Vp, Ep), lambda i, t: (0, 0)),
                pl.BlockSpec((1, 6 * Hp + Vp), lambda i, t: (0, 0)),
            ],
            out_specs=pl.BlockSpec((1, bt, Vp), lambda i, t: (t, i, 0)),
            scratch_shapes=[pltpu.VMEM((bt, Ep + Hp), jnp.float32),   # [emb | h]
                            pltpu.VMEM((bt, Hp), jnp.float32)],       # c
        ),
        compiler_params=pltpu.CompilerParams(
            dimension_semantics=("parallel", "arbitrary"),
            vmem_limit_bytes=_vmem_limit_bytes(bt, Lp, Dp, Ep, Hp, Vp)),
    )(emb_seq, enc_padded, w_attn, w_gates, w_fc, emb_table, bias)
    return out


def nre_img2seq_forward(trg, encoder_out, prep, teacher_forcing=False):
    """Mirror of NRE_Img2Seq.forward (write_flag=False): zero-initialized hidden/
    cell, loop over target positions, argmax (module default) or teacher-forced
    feedback.  trg: (B, trg_len) int ids; returns outputs (trg_len, B, V)."""
    B, T = trg.shape
    V = prep["dims"]["V"]
    enc_p = prepare_encoder_out(encoder_out, prep)
    out = _nre_forward_impl(trg.T, enc_p, prep["embedding"], prep["w_attn"],
                            prep["w_gates"], prep["w_fc"], prep["emb_table"],
                            prep["bias"], teacher_forcing=teacher_forcing,
                            true_L=encoder_out.shape[1])
    preds = out[:, :B, :V]                                      # (T-1, B, V)
    return jnp.concatenate([jnp.zeros((1, B, V), jnp.float32), preds], axis=0)


# --------------------------------------------------------------------------- references
def nre_decoder_reference(dec_src, encoder_out, hidden, cell, params, hid_dim):
    """Pure-JAX f32 mirror of the PyTorch decoder forward."""
    H = hid_dim
    emb = params["embedding"][dec_src][None]                            # (1, B, E)
    L = encoder_out.shape[1]
    hid = jnp.transpose(jnp.tile(hidden, (L, 1, 1)), (1, 0, 2))         # (B, L, H)
    cat = jnp.concatenate([hid, encoder_out], axis=2)
    energy = jnp.tanh(cat @ params["attn_w"].T + params["attn_b"])
    attention = (energy @ params["v_w"].T)[..., 0]                      # (B, L)
    a = jax.nn.softmax(attention, axis=1)[None]                         # (1, B, L)
    weighted = jnp.einsum("bol,bld->bod", jnp.transpose(a, (1, 0, 2)), encoder_out)
    weighted = jnp.transpose(weighted, (1, 0, 2))                       # (1, B, D)
    lstm_in = jnp.concatenate([emb, weighted], axis=2)
    x = (lstm_in @ params["in_w"].T + params["in_b"])[0]                # (B, E)
    gates = (x @ params["w_ih"].T + params["b_ih"]
             + hidden[0] @ params["w_hh"].T + params["b_hh"])
    i_g = jax.nn.sigmoid(gates[:, :H]); f_g = jax.nn.sigmoid(gates[:, H:2 * H])
    g_g = jnp.tanh(gates[:, 2 * H:3 * H]); o_g = jax.nn.sigmoid(gates[:, 3 * H:])
    c_new = f_g * cell[0] + i_g * g_g
    h_new = o_g * jnp.tanh(c_new)
    pred = h_new @ params["fc_w"].T + params["fc_b"]
    return pred, h_new[None], c_new[None]


def nre_img2seq_reference(trg, encoder_out, params, hid_dim, teacher_forcing=False):
    B, trg_len = trg.shape
    V = params["fc_w"].shape[0]
    hidden = jnp.zeros((1, B, hid_dim), jnp.float32)
    cell = jnp.zeros((1, B, hid_dim), jnp.float32)
    trg_t = trg.T
    outputs = [jnp.zeros((B, V), jnp.float32)]
    dec_src = trg_t[0]
    for t in range(1, trg_len):
        output, hidden, cell = nre_decoder_reference(
            dec_src, encoder_out, hidden, cell, params, hid_dim)
        outputs.append(output)
        dec_src = trg_t[t] if teacher_forcing else jnp.argmax(output, axis=1)
    return jnp.stack(outputs, axis=0)


def nre_prep_reference(trg, encoder_out, prep, teacher_forcing=False):
    """Mirror of the exact kernel math (folded / padded / bf16 weights, f32
    accumulation, in-loop argmax feedback) in plain JAX, for tight verification."""
    d = prep["dims"]
    Ep, Hp, Vp, V = d["Ep"], d["Hp"], d["Vp"], d["V"]
    f32, bf16 = jnp.float32, jnp.bfloat16
    L = encoder_out.shape[1]
    enc = prepare_encoder_out(encoder_out, prep)                   # (B, Lp, Dp)
    B, Lp, Dp = enc.shape
    T = trg.shape[1]

    wa, wg, wf = prep["w_attn"], prep["w_gates"], prep["w_fc"]
    et_f32 = prep["emb_table"].astype(f32)
    bias = prep["bias"][0]
    ba, v_row = bias[:Hp], bias[Hp:2 * Hp]
    bg, bfc = bias[2 * Hp:6 * Hp], bias[6 * Hp:]

    trg_t = trg.T
    emb = prep["embedding"][trg_t[0]]                              # (B, Ep) f32
    h = jnp.zeros((B, Hp), f32)
    c = jnp.zeros((B, Hp), f32)
    outs = [jnp.zeros((B, V), f32)]
    for t in range(1, T):
        hid_part = jnp.dot(h.astype(bf16), wa[:Hp], preferred_element_type=f32)
        enc_part = jnp.dot(enc.reshape(B * Lp, Dp).astype(bf16), wa[Hp:],
                           preferred_element_type=f32).reshape(B, Lp, Hp)
        energy = jnp.tanh(enc_part + hid_part[:, None, :] + ba[None, None, :])
        scores = jnp.sum(energy * v_row[None, None, :], axis=-1)
        if Lp != L:
            scores = jnp.where(jnp.arange(Lp)[None, :] < L, scores, -1e30)
        m = jnp.max(scores, axis=1, keepdims=True)
        e = jnp.exp(scores - m)
        a = e / jnp.sum(e, axis=1, keepdims=True)
        weighted = jnp.sum(a[:, :, None] * enc, axis=1)
        eh = jnp.concatenate([emb, h], axis=1)
        gates = (jnp.dot(eh.astype(bf16), wg[:Ep + Hp], preferred_element_type=f32)
                 + jnp.dot(weighted.astype(bf16), wg[Ep + Hp:], preferred_element_type=f32)
                 + bg[None, :])
        i_g = jax.nn.sigmoid(gates[:, :Hp]); f_g = jax.nn.sigmoid(gates[:, Hp:2 * Hp])
        g_g = jnp.tanh(gates[:, 2 * Hp:3 * Hp]); o_g = jax.nn.sigmoid(gates[:, 3 * Hp:])
        c = f_g * c + i_g * g_g
        h = o_g * jnp.tanh(c)
        pred_full = jnp.dot(h.astype(bf16), wf, preferred_element_type=f32) + bfc[None, :]
        outs.append(pred_full[:, :V])
        if teacher_forcing:
            emb = prep["embedding"][trg_t[t]]
        else:
            emb = et_f32[jnp.argmax(pred_full, axis=1)]
    return jnp.stack(outs, axis=0)


# --------------------------------------------------------------------------- main
if __name__ == "__main__":
    embed_dim, encoder_dim, hid_dim, output_dim = 16, 32, 32, 64
    B, L, trg_len = 8, 7, 5                      # L=7 exercises source-length padding

    key = jax.random.PRNGKey(0)
    k_p, k_enc, k_trg = jax.random.split(key, 3)

    params = init_params(k_p, embed_dim, encoder_dim, hid_dim, output_dim)
    prep = prepare_params(params, embed_dim, encoder_dim, hid_dim, output_dim)

    encoder_out = jax.random.normal(k_enc, (B, L, encoder_dim), jnp.float32)
    trg = jax.random.randint(k_trg, (B, trg_len), 0, output_dim, dtype=jnp.int32)

    # 1) free-running decode (module default: argmax feedback, all in-kernel)
    outs_free = nre_img2seq_forward(trg, encoder_out, prep, teacher_forcing=False)
    jax.block_until_ready(outs_free)
    outs_free_ref = nre_prep_reference(trg, encoder_out, prep, teacher_forcing=False)
    assert outs_free.shape == (trg_len, B, output_dim)
    assert jnp.allclose(outs_free, outs_free_ref, atol=2e-3, rtol=2e-3)

    # 2) teacher-forced decode: exact-math check + check against the f32
    #    PyTorch-mirror reference (tolerance covers bf16 weights + folding)
    outs_tf = nre_img2seq_forward(trg, encoder_out, prep, teacher_forcing=True)
    jax.block_until_ready(outs_tf)
    outs_tf_prep = nre_prep_reference(trg, encoder_out, prep, teacher_forcing=True)
    outs_tf_raw = nre_img2seq_reference(trg, encoder_out, params, hid_dim,
                                        teacher_forcing=True)
    assert outs_tf.shape == (trg_len, B, output_dim)
    assert jnp.allclose(outs_tf, outs_tf_prep, atol=2e-3, rtol=2e-3)
    assert jnp.allclose(outs_tf, outs_tf_raw, atol=2e-2, rtol=2e-2)

    print("KERNEL_OK")
</pallas_src>

<mosaic_0001>
module attributes {stable_mosaic.version = 11 : i64} {
  func.func @nre_fused_kernel(%arg0: i32, %arg1: i32, %arg2: memref<1x8x128xf32, #tpu.memory_space<vmem>>, %arg3: memref<8x8x128xf32, #tpu.memory_space<vmem>>, %arg4: memref<256x128xbf16, #tpu.memory_space<vmem>>, %arg5: memref<384x512xbf16, #tpu.memory_space<vmem>>, %arg6: memref<128x128xbf16, #tpu.memory_space<vmem>>, %arg7: memref<128x128xbf16, #tpu.memory_space<vmem>>, %arg8: memref<1x896xf32, #tpu.memory_space<vmem>>, %arg9: memref<1x8x128xf32, #tpu.memory_space<vmem>>, %arg10: memref<8x256xf32, #tpu.memory_space<vmem>>, %arg11: memref<8x128xf32, #tpu.memory_space<vmem>>) attributes {dimension_semantics = [#tpu.dimension_semantics<parallel>, #tpu.dimension_semantics<arbitrary>], iteration_bounds = array<i64: 1, 4>, scalar_prefetch = 0 : i64, scratch_operands = 2 : i64, tpu.core_type = #tpu.core_type<tc>, window_params = [{transform_indices = @transform_0, window_bounds = array<i64: 1, 8, 128>}, {transform_indices = @transform_1, window_bounds = array<i64: 8, 8, 128>}, {pipeline_mode = #tpu.pipeline_mode<synchronous>, transform_indices = @transform_2, window_bounds = array<i64: 256, 128>}, {pipeline_mode = #tpu.pipeline_mode<synchronous>, transform_indices = @transform_3, window_bounds = array<i64: 384, 512>}, {pipeline_mode = #tpu.pipeline_mode<synchronous>, transform_indices = @transform_4, window_bounds = array<i64: 128, 128>}, {pipeline_mode = #tpu.pipeline_mode<synchronous>, transform_indices = @transform_5, window_bounds = array<i64: 128, 128>}, {pipeline_mode = #tpu.pipeline_mode<synchronous>, transform_indices = @transform_6, window_bounds = array<i64: 1, 896>}, {transform_indices = @transform_7, window_bounds = array<i64: 1, 8, 128>}]} {
    %c0 = arith.constant 0 : index
    %c0_0 = arith.constant 0 : index
    %0 = vector.load %arg8[%c0, %c0_0] : memref<1x896xf32, #tpu.memory_space<vmem>>, vector<1x128xf32>
    %c0_1 = arith.constant 0 : index
    %c128 = arith.constant 128 : index
    %1 = vector.load %arg8[%c0_1, %c128] : memref<1x896xf32, #tpu.memory_space<vmem>>, vector<1x128xf32>
    %c0_2 = arith.constant 0 : index
    %c256 = arith.constant 256 : index
    %2 = vector.load %arg8[%c0_2, %c256] : memref<1x896xf32, #tpu.memory_space<vmem>>, vector<1x512xf32>
    %c0_3 = arith.constant 0 : index
    %c768 = arith.constant 768 : index
    %3 = vector.load %arg8[%c0_3, %c768] : memref<1x896xf32, #tpu.memory_space<vmem>>, vector<1x128xf32>
    %c0_i32 = arith.constant 0 : i32
    %4 = arith.cmpi eq, %arg1, %c0_i32 : i32
    %5 = arith.extui %4 : i1 to i32
    %c0_i32_4 = arith.constant 0 : i32
    %6 = arith.cmpi ne, %5, %c0_i32_4 : i32
    scf.if %6 {
      %cst_51 = arith.constant 0.000000e+00 : f32
      %110 = vector.broadcast %cst_51 : f32 to vector<8x128xf32>
      %c0_52 = arith.constant 0 : index
      %c128_53 = arith.constant 128 : index
      %111 = vector.load %arg10[%c0_52, %c128_53] : memref<8x256xf32, #tpu.memory_space<vmem>>, vector<8x128xf32>
      tpu.vector_store %arg10[%c0_52, %c128_53], %110 {strides = array<i32>} : memref<8x256xf32, #tpu.memory_space<vmem>>, vector<8x128xf32>,
      %cst_54 = arith.constant 0.000000e+00 : f32
      %112 = vector.broadcast %cst_54 : f32 to vector<8x128xf32>
      %c0_55 = arith.constant 0 : index
      %c0_56 = arith.constant 0 : index
      %113 = vector.load %arg11[%c0_55, %c0_56] : memref<8x128xf32, #tpu.memory_space<vmem>>, vector<8x128xf32>
      tpu.vector_store %arg11[%c0_55, %c0_56], %112 {strides = array<i32>} : memref<8x128xf32, #tpu.memory_space<vmem>>, vector<8x128xf32>,
      %c0_57 = arith.constant 0 : index
      %c0_58 = arith.constant 0 : index
      %c0_59 = arith.constant 0 : index
      %114 = vector.load %arg2[%c0_57, %c0_58, %c0_59] : memref<1x8x128xf32, #tpu.memory_space<vmem>>, vector<1x8x128xf32>
      %115 = vector.shape_cast %114 : vector<1x8x128xf32> to vector<8x128xf32>
      %c0_60 = arith.constant 0 : index
      %c0_61 = arith.constant 0 : index
      %116 = vector.load %arg10[%c0_60, %c0_61] : memref<8x256xf32, #tpu.memory_space<vmem>>, vector<8x128xf32>
      tpu.vector_store %arg10[%c0_60, %c0_61], %115 {strides = array<i32>} : memref<8x256xf32, #tpu.memory_space<vmem>>, vector<8x128xf32>,
    } else {
    }
    %c0_5 = arith.constant 0 : index
    %c0_6 = arith.constant 0 : index
    %c0_7 = arith.constant 0 : index
    %7 = vector.load %arg3[%c0_5, %c0_6, %c0_7] : memref<8x8x128xf32, #tpu.memory_space<vmem>>, vector<8x8x128xf32>
    %c0_8 = arith.constant 0 : index
    %c128_9 = arith.constant 128 : index
    %8 = vector.load %arg10[%c0_8, %c128_9] : memref<8x256xf32, #tpu.memory_space<vmem>>, vector<8x128xf32>
    %9 = arith.truncf %8 : vector<8x128xf32> to vector<8x128xbf16>
    %c0_10 = arith.constant 0 : index
    %c0_11 = arith.constant 0 : index
    %10 = vector.load %arg4[%c0_10, %c0_11] : memref<256x128xbf16, #tpu.memory_space<vmem>>, vector<128x128xbf16>
    %cst = arith.constant dense<0.000000e+00> : vector<8x128xf32>
    %11 = tpu.matmul %9, %10, %cst {dimension_numbers = #tpu.dot_dimension_numbers<[1], [0], [0], [1], [0, 0, 1, 1], [], []>} : vector<8x128xbf16>, vector<128x128xbf16>, vector<8x128xf32> -> vector<8x128xf32>
    %12 = vector.shape_cast %7 : vector<8x8x128xf32> to vector<64x128xf32>
    %13 = arith.truncf %12 : vector<64x128xf32> to vector<64x128xbf16>
    %c128_12 = arith.constant 128 : index
    %c0_13 = arith.constant 0 : index
    %14 = vector.load %arg4[%c128_12, %c0_13] : memref<256x128xbf16, #tpu.memory_space<vmem>>, vector<128x128xbf16>
    %cst_14 = arith.constant dense<0.000000e+00> : vector<64x128xf32>
    %15 = tpu.matmul %13, %14, %cst_14 {dimension_numbers = #tpu.dot_dimension_numbers<[1], [0], [0], [1], [0, 0, 1, 1], [], []>} : vector<64x128xbf16>, vector<128x128xbf16>, vector<64x128xf32> -> vector<64x128xf32>
    %16 = vector.shape_cast %15 : vector<64x128xf32> to vector<8x8x128xf32>
    %17 = vector.shape_cast %11 : vector<8x128xf32> to vector<8x1x128xf32>
    %18 = vector.broadcast %17 : vector<8x1x128xf32> to vector<8x8x128xf32>
    %19 = arith.addf %16, %18 : vector<8x8x128xf32>
    %20 = vector.shape_cast %0 : vector<1x128xf32> to vector<1x1x128xf32>
    %21 = vector.broadcast %20 : vector<1x1x128xf32> to vector<8x8x128xf32>
    %22 = arith.addf %19, %21 : vector<8x8x128xf32>
    %23 = math.tanh %22 : vector<8x8x128xf32>
    %24 = vector.shape_cast %1 : vector<1x128xf32> to vector<1x1x128xf32>
    %25 = vector.broadcast %24 : vector<1x1x128xf32> to vector<8x8x128xf32>
    %26 = arith.mulf %23, %25 : vector<8x8x128xf32>
    %cst_15 = arith.constant dense<0.000000e+00> : vector<8x8xf32>
    %27 = vector.multi_reduction <add>, %26, %cst_15 [2] : vector<8x8x128xf32> to vector<8x8xf32>
    %28 = tpu.iota {dimensions = array<i32: 1>} : vector<8x8xi32>
    %c7_i32 = arith.constant 7 : i32
    %29 = vector.broadcast %c7_i32 : i32 to vector<8x8xi32>
    %30 = arith.cmpi slt, %28, %29 : vector<8x8xi32>
    %cst_16 = arith.constant -1.000000e+30 : f32
    %31 = vector.broadcast %cst_16 : f32 to vector<8x8xf32>
    %32 = arith.select %30, %27, %31 : vector<8x8xi1>, vector<8x8xf32>
    %cst_17 = arith.constant dense<0xFF800000> : vector<8xf32>
    %33 = vector.multi_reduction <maximumf>, %32, %cst_17 [1] : vector<8x8xf32> to vector<8xf32>
    %34 = vector.shape_cast %33 : vector<8xf32> to vector<8x1xf32>
    %35 = vector.broadcast %34 : vector<8x1xf32> to vector<8x8xf32>
    %36 = arith.subf %32, %35 : vector<8x8xf32>
    %37 = math.exp %36 : vector<8x8xf32>
    %cst_18 = arith.constant dense<0.000000e+00> : vector<8xf32>
    %38 = vector.multi_reduction <add>, %37, %cst_18 [1] : vector<8x8xf32> to vector<8xf32>
    %39 = vector.shape_cast %38 : vector<8xf32> to vector<8x1xf32>
    %40 = vector.broadcast %39 : vector<8x1xf32> to vector<8x8xf32>
    %41 = arith.divf %37, %40 : vector<8x8xf32>
    %42 = vector.shape_cast %41 : vector<8x8xf32> to vector<8x8x1xf32>
    %43 = vector.broadcast %42 : vector<8x8x1xf32> to vector<8x8x128xf32>
    %44 = arith.mulf %43, %7 : vector<8x8x128xf32>
    %cst_19 = arith.constant dense<0.000000e+00> : vector<8x128xf32>
    %45 = vector.multi_reduction <add>, %44, %cst_19 [1] : vector<8x8x128xf32> to vector<8x128xf32>
    %c0_20 = arith.constant 0 : index
    %c0_21 = arith.constant 0 : index
    %46 = vector.load %arg10[%c0_20, %c0_21] : memref<8x256xf32, #tpu.memory_space<vmem>>, vector<8x256xf32>
    %47 = arith.truncf %46 : vector<8x256xf32> to vector<8x256xbf16>
    %c0_22 = arith.constant 0 : index
    %c0_23 = arith.constant 0 : index
    %48 = vector.load %arg5[%c0_22, %c0_23] : memref<384x512xbf16, #tpu.memory_space<vmem>>, vector<256x512xbf16>
    %cst_24 = arith.constant dense<0.000000e+00> : vector<8x512xf32>
    %49 = tpu.matmul %47, %48, %cst_24 {dimension_numbers = #tpu.dot_dimension_numbers<[1], [0], [0], [1], [0, 0, 1, 1], [], []>} : vector<8x256xbf16>, vector<256x512xbf16>, vector<8x512xf32> -> vector<8x512xf32>
    %50 = arith.truncf %45 : vector<8x128xf32> to vector<8x128xbf16>
    %c256_25 = arith.constant 256 : index
    %c0_26 = arith.constant 0 : index
    %51 = vector.load %arg5[%c256_25, %c0_26] : memref<384x512xbf16, #tpu.memory_space<vmem>>, vector<128x512xbf16>
    %cst_27 = arith.constant dense<0.000000e+00> : vector<8x512xf32>
    %52 = tpu.matmul %50, %51, %cst_27 {dimension_numbers = #tpu.dot_dimension_numbers<[1], [0], [0], [1], [0, 0, 1, 1], [], []>} : vector<8x128xbf16>, vector<128x512xbf16>, vector<8x512xf32> -> vector<8x512xf32>
    %53 = arith.addf %49, %52 : vector<8x512xf32>
    %54 = vector.broadcast %2 : vector<1x512xf32> to vector<8x512xf32>
    %55 = arith.addf %53, %54 : vector<8x512xf32>
    %56 = vector.extract_strided_slice %55 {offsets = [0, 0], sizes = [8, 128], strides = [1, 1]} : vector<8x512xf32> to vector<8x128xf32>
    %57 = arith.negf %56 : vector<8x128xf32>
    %58 = math.exp %57 : vector<8x128xf32>
    %cst_28 = arith.constant 1.000000e+00 : f32
    %59 = vector.broadcast %cst_28 : f32 to vector<8x128xf32>
    %60 = arith.addf %59, %58 : vector<8x128xf32>
    %61 = arith.divf %59, %60 : vector<8x128xf32>
    %62 = vector.extract_strided_slice %55 {offsets = [0, 128], sizes = [8, 128], strides = [1, 1]} : vector<8x512xf32> to vector<8x128xf32>
    %63 = arith.negf %62 : vector<8x128xf32>
    %64 = math.exp %63 : vector<8x128xf32>
    %cst_29 = arith.constant 1.000000e+00 : f32
    %65 = vector.broadcast %cst_29 : f32 to vector<8x128xf32>
    %66 = arith.addf %65, %64 : vector<8x128xf32>
    %67 = arith.divf %65, %66 : vector<8x128xf32>
    %68 = vector.extract_strided_slice %55 {offsets = [0, 256], sizes = [8, 128], strides = [1, 1]} : vector<8x512xf32> to vector<8x128xf32>
    %69 = math.tanh %68 : vector<8x128xf32>
    %70 = vector.extract_strided_slice %55 {offsets = [0, 384], sizes = [8, 128], strides = [1, 1]} : vector<8x512xf32> to vector<8x128xf32>
    %71 = arith.negf %70 : vector<8x128xf32>
    %72 = math.exp %71 : vector<8x128xf32>
    %cst_30 = arith.constant 1.000000e+00 : f32
    %73 = vector.broadcast %cst_30 : f32 to vector<8x128xf32>
    %74 = arith.addf %73, %72 : vector<8x128xf32>
    %75 = arith.divf %73, %74 : vector<8x128xf32>
    %c0_31 = arith.constant 0 : index
    %c0_32 = arith.constant 0 : index
    %76 = vector.load %arg11[%c0_31, %c0_32] : memref<8x128xf32, #tpu.memory_space<vmem>>, vector<8x128xf32>
    %77 = arith.mulf %67, %76 : vector<8x128xf32>
    %78 = arith.mulf %61, %69 : vector<8x128xf32>
    %79 = arith.addf %77, %78 : vector<8x128xf32>
    %80 = math.tanh %79 : vector<8x128xf32>
    %81 = arith.mulf %75, %80 : vector<8x128xf32>
    %82 = arith.truncf %81 : vector<8x128xf32> to vector<8x128xbf16>
    %c0_33 = arith.constant 0 : index
    %c0_34 = arith.constant 0 : index
    %83 = vector.load %arg6[%c0_33, %c0_34] : memref<128x128xbf16, #tpu.memory_space<vmem>>, vector<128x128xbf16>
    %cst_35 = arith.constant dense<0.000000e+00> : vector<8x128xf32>
    %84 = tpu.matmul %82, %83, %cst_35 {dimension_numbers = #tpu.dot_dimension_numbers<[1], [0], [0], [1], [0, 0, 1, 1], [], []>} : vector<8x128xbf16>, vector<128x128xbf16>, vector<8x128xf32> -> vector<8x128xf32>
    %85 = vector.broadcast %3 : vector<1x128xf32> to vector<8x128xf32>
    %86 = arith.addf %84, %85 : vector<8x128xf32>
    %c0_36 = arith.constant 0 : index
    %c0_37 = arith.constant 0 : index
    %c0_38 = arith.constant 0 : index
    %87 = vector.load %arg9[%c0_36, %c0_37, %c0_38] : memref<1x8x128xf32, #tpu.memory_space<vmem>>, vector<1x8x128xf32>
    %88 = vector.shape_cast %87 : vector<1x8x128xf32> to vector<8x128xf32>
    %89 = vector.shape_cast %86 : vector<8x128xf32> to vector<1x8x128xf32>
    tpu.vector_store %arg9[%c0_36, %c0_37, %c0_38], %89 {strides = array<i32>} : memref<1x8x128xf32, #tpu.memory_space<vmem>>, vector<1x8x128xf32>,
    %c0_39 = arith.constant 0 : index
    %c128_40 = arith.constant 128 : index
    %90 = vector.load %arg10[%c0_39, %c128_40] : memref<8x256xf32, #tpu.memory_space<vmem>>, vector<8x128xf32>
    tpu.vector_store %arg10[%c0_39, %c128_40], %81 {strides = array<i32>} : memref<8x256xf32, #tpu.memory_space<vmem>>, vector<8x128xf32>,
    %c0_41 = arith.constant 0 : index
    %c0_42 = arith.constant 0 : index
    %91 = vector.load %arg11[%c0_41, %c0_42] : memref<8x128xf32, #tpu.memory_space<vmem>>, vector<8x128xf32>
    tpu.vector_store %arg11[%c0_41, %c0_42], %79 {strides = array<i32>} : memref<8x128xf32, #tpu.memory_space<vmem>>, vector<8x128xf32>,
    %92 = tpu.iota {dimensions = array<i32: 1>} : vector<8x128xi32>
    %93 = arith.sitofp %92 : vector<8x128xi32> to vector<8x128xf32>
    %cst_43 = arith.constant dense<0xFF800000> : vector<8xf32>
    %94 = vector.multi_reduction <maximumf>, %86, %cst_43 [1] : vector<8x128xf32> to vector<8xf32>
    %95 = vector.shape_cast %94 : vector<8xf32> to vector<8x1xf32>
    %96 = vector.broadcast %95 : vector<8x1xf32> to vector<8x128xf32>
    %97 = arith.cmpf oeq, %86, %96 : vector<8x128xf32>
    %cst_44 = arith.constant 1.280000e+02 : f32
    %98 = vector.broadcast %cst_44 : f32 to vector<8x128xf32>
    %99 = arith.select %97, %93, %98 : vector<8x128xi1>, vector<8x128xf32>
    %cst_45 = arith.constant dense<0x7F800000> : vector<8xf32>
    %100 = vector.multi_reduction <minimumf>, %99, %cst_45 [1] : vector<8x128xf32> to vector<8xf32>
    %101 = vector.shape_cast %100 : vector<8xf32> to vector<8x1xf32>
    %102 = vector.broadcast %101 : vector<8x1xf32> to vector<8x128xf32>
    %103 = arith.cmpf oeq, %93, %102 : vector<8x128xf32>
    %104 = arith.extui %103 : vector<8x128xi1> to vector<8x128xi32>
    %105 = arith.sitofp %104 : vector<8x128xi32> to vector<8x128xf32>
    %106 = arith.truncf %105 : vector<8x128xf32> to vector<8x128xbf16>
    %c0_46 = arith.constant 0 : index
    %c0_47 = arith.constant 0 : index
    %107 = vector.load %arg7[%c0_46, %c0_47] : memref<128x128xbf16, #tpu.memory_space<vmem>>, vector<128x128xbf16>
    %cst_48 = arith.constant dense<0.000000e+00> : vector<8x128xf32>
    %108 = tpu.matmul %106, %107, %cst_48 {dimension_numbers = #tpu.dot_dimension_numbers<[1], [0], [0], [1], [0, 0, 1, 1], [], []>} : vector<8x128xbf16>, vector<128x128xbf16>, vector<8x128xf32> -> vector<8x128xf32>
    %c0_49 = arith.constant 0 : index
    %c0_50 = arith.constant 0 : index
    %109 = vector.load %arg10[%c0_49, %c0_50] : memref<8x256xf32, #tpu.memory_space<vmem>>, vector<8x128xf32>
    tpu.vector_store %arg10[%c0_49, %c0_50], %108 {strides = array<i32>} : memref<8x256xf32, #tpu.memory_space<vmem>>, vector<8x128xf32>,
    return
  }
  func.func @transform_0(%arg0: i32, %arg1: i32) -> (i32, i32, i32) {
    %c0_i32 = arith.constant 0 : i32
    %c0_i32_0 = arith.constant 0 : i32
    %c0_i32_1 = arith.constant 0 : i32
    return %c0_i32, %arg0, %c0_i32_0 : i32, i32, i32
  }
  func.func @transform_1(%arg0: i32, %arg1: i32) -> (i32, i32, i32) {
    %c0_i32 = arith.constant 0 : i32
    %c0_i32_0 = arith.constant 0 : i32
    %c0_i32_1 = arith.constant 0 : i32
    return %arg0, %c0_i32, %c0_i32_0 : i32, i32, i32
  }
  func.func @transform_2(%arg0: i32, %arg1: i32) -> (i32, i32) {
    %c0_i32 = arith.constant 0 : i32
    %c0_i32_0 = arith.constant 0 : i32
    %c0_i32_1 = arith.constant 0 : i32
    return %c0_i32, %c0_i32_0 : i32, i32
  }
  func.func @transform_3(%arg0: i32, %arg1: i32) -> (i32, i32) {
    %c0_i32 = arith.constant 0 : i32
    %c0_i32_0 = arith.constant 0 : i32
    %c0_i32_1 = arith.constant 0 : i32
    return %c0_i32, %c0_i32_0 : i32, i32
  }
  func.func @transform_4(%arg0: i32, %arg1: i32) -> (i32, i32) {
    %c0_i32 = arith.constant 0 : i32
    %c0_i32_0 = arith.constant 0 : i32
    %c0_i32_1 = arith.constant 0 : i32
    return %c0_i32, %c0_i32_0 : i32, i32
  }
  func.func @transform_5(%arg0: i32, %arg1: i32) -> (i32, i32) {
    %c0_i32 = arith.constant 0 : i32
    %c0_i32_0 = arith.constant 0 : i32
    %c0_i32_1 = arith.constant 0 : i32
    return %c0_i32, %c0_i32_0 : i32, i32
  }
  func.func @transform_6(%arg0: i32, %arg1: i32) -> (i32, i32) {
    %c0_i32 = arith.constant 0 : i32
    %c0_i32_0 = arith.constant 0 : i32
    %c0_i32_1 = arith.constant 0 : i32
    return %c0_i32, %c0_i32_0 : i32, i32
  }
  func.func @transform_7(%arg0: i32, %arg1: i32) -> (i32, i32, i32) {
    %c0_i32 = arith.constant 0 : i32
    %c0_i32_0 = arith.constant 0 : i32
    return %arg1, %arg0, %c0_i32 : i32, i32, i32
  }
}

</mosaic_0001>

<llo_original>
// kernel: _nre_forward_impl.1
$region0: #{_nre_forward_impl.1}
  #allocation0 [shape = 'u32[]', space=smem, size = 0x4, offset = 0x4, fixed_abs, tag = 'smem constant byte address 0x4 - core index']
  #allocation1 [shape = 'u32[72,128]{1,0:T(1,128)}', space=vmem, size = 0x9000, scoped, tag = 'internal scratch']
  #allocation2 [shape = 'f32[8,256]{1,0:T(8,128)}', space=vmem, size = 0x2000, scoped, tag = 'scratch operand']
  #allocation3 [shape = 'f32[8,128]{1,0:T(8,128)}', space=vmem, size = 0x1000, scoped, tag = 'scratch operand']
  %s0 = inlined_call_operand.vmem [shape: f32[1,8,128], index: 0, kind: input, shape index: {}]
  %s1 = inlined_call_operand.vmem [shape: f32[8,8,128], index: 1, kind: input, shape index: {}]
  %s2 = inlined_call_operand.hbm [shape: bf16[256,128], index: 2, kind: input, shape index: {}]
  %s3 = inlined_call_operand.hbm [shape: bf16[384,512], index: 3, kind: input, shape index: {}]
  %s4 = inlined_call_operand.hbm [shape: bf16[128,128], index: 4, kind: input, shape index: {}]
  %s5 = inlined_call_operand.hbm [shape: bf16[128,128], index: 5, kind: input, shape index: {}]
  %s6 = inlined_call_operand.vmem [shape: f32[1,896], index: 6, kind: input, shape index: {}]
  %s7 = inlined_call_operand.hbm [shape: f32[4,8,128], index: 7, kind: output, shape index: {}]
  %s8 = sld [smem:[#allocation0]]
  $region81: #{_nre_forward_impl.1} parent=0
    _
  %s10 = ssub.s32 1, %s8
  %s11 = scalar_select 0, %s10, %s8
  $region1: #{_nre_forward_impl.1} parent=0
    #allocation4 [shape = 'u8[65536]{0}', space=vmem, size = 0x10000, scoped, tag = 'input window, operand 2, single buffered']
    #allocation5 [shape = 's32[2]{0}', space=sflag, size = 0x8, scoped, tag = 'scoped memory for _nre_forward_impl.1']
    #allocation6 [shape = 's32[2]{0}', space=sflag, size = 0x8, scoped, tag = 'scoped memory for _nre_forward_impl.1']
    #allocation7 [shape = 'u8[393216]{0}', space=vmem, size = 0x60000, scoped, tag = 'input window, operand 3, single buffered']
    #allocation8 [shape = 's32[1]{0}', space=sflag, size = 0x4, scoped, tag = 'scoped memory for _nre_forward_impl.1']
    #allocation9 [shape = 'u8[32768]{0}', space=vmem, size = 0x8000, scoped, tag = 'input window, operand 4, single buffered']
    #allocation10 [shape = 'u8[32768]{0}', space=vmem, size = 0x8000, scoped, tag = 'input window, operand 5, single buffered']
    #allocation11 [shape = 's32[1]{0}', space=sflag, size = 0x4, scoped, tag = 'scoped memory for _nre_forward_impl.1']
    #allocation12 [shape = 'u8[8192]{0}', space=vmem, size = 0x2000, scoped, tag = 'output window, operand 0']
    %12 = vsyncpa [#allocation5], 0
    %13 = vsyncpa [#allocation8], 0
    %14 = vsyncpa [#allocation11], 0
    %15 = vsyncpa [#allocation6], 0
    %s16 = scalar_lea.sflag [#allocation6], 1
    %17 = vsyncpa %s16, 0
    loop: start=0, step=1, limit=6
    $region2: #{_nre_forward_impl.1} parent=1 // loop_pre_header
      _
    $region3: #{_nre_forward_impl.1} parent=1 // loop_header
      %s19 = sphi 0, %s23
      %p20 = scmp.ge.s32.totalorder %s19, 6
      %s26 = sphi 0, %s38
      %s27 = sphi 0, %s34
      %s28 = sphi 0, %s26
      %s29 = sphi 0, %s27
      %s30 = sphi 0, %s28
      %s31 = sphi 0, %s29
      %s41 = sphi 0, %s43
      %s44 = sphi 0, %s41
      %s45 = sphi 0, %s44
      %s61 = sphi 0, %s45
      %s67 = sphi 0, %s69
      %s70 = sphi 0, %s67
      %s71 = sphi 0, %s70
      %s87 = sphi 0, %s71
      %s91 = sphi 0, %s91
      %s93 = sphi 0, %s91
      %s94 = sphi 0, %s93
      %s108 = sphi 0, %s94
      %s112 = sphi 0, %s112
      %s114 = sphi 0, %s112
      %s115 = sphi 0, %s114
      %s129 = sphi 0, %s115
      %s133 = sphi 0, %s133
      %s135 = sphi 0, %s133
      %s136 = sphi 0, %s135
      %s150 = sphi 0, %s136
      %s154 = sphi 0, %s154
      %s156 = sphi 0, %s154
      %s157 = sphi 0, %s156
      %s171 = sphi 0, %s157
      %s175 = sphi 0, %s175
      %s177 = sphi 0, %s175
      %s178 = sphi 0, %s177
      %s192 = sphi 0, %s178
      %s200 = sphi 0, %s202
      %s203 = sphi 0, %s200
      %s204 = sphi 0, %s203
      %s220 = sphi 0, %s204
    $region4: #{_nre_forward_impl.1} parent=1 // loop_header_branch
      %22 = sbr.rel (%p20) target = $region8
    $region5: #{_nre_forward_impl.1} parent=1 // loop_body
      %s24 = ssub.s32 %s19, 1
      %s25 = ssub.s32 %s19, 2
      %s32 = sadd.s32 1, %s27
      %p33 = scmp.ge.s32.totalorder %s32, 4
      %s34 = scalar_select %p33, 0, %s32
      %s35 = sadd.s32 1, %s26
      %s36 = scalar_select %p33, %s35, %s26
      %p37 = scmp.ge.s32.totalorder %s36, 1
      %s38 = scalar_select %p37, 0, %s36
      %s39 = ssub.s32 %s26, %s38
      %p40 = scmp.eq.s32.totalorder %s39, 0
      %s42 = sadd.s32 %s41, 1
      %s43 = scalar_select %p40, %s41, %s42
      %p46 = pneg %p40
      %p47 = scmp.eq.s32.totalorder %s19, 3
      %p48 = por %p46, %p47
      %p49 = scmp.ne.s32.totalorder %s41, %s44
      %p50 = scmp.eq.s32.totalorder %s19, 0
      %p51 = por %p49, %p50
      %p52 = scmp.ne.s32.totalorder %s41, %s44
      %p53 = scmp.eq.s32.totalorder %s24, 3
      %p54 = por %p52, %p53
      %p55 = scmp.ne.s32.totalorder %s44, %s45
      %p56 = scmp.eq.s32.totalorder %s24, 0
      %p57 = por %p55, %p56
      %p58 = scmp.ne.s32.totalorder %s44, %s45
      %p59 = scmp.eq.s32.totalorder %s25, 3
      %p60 = por %p58, %p59
      %p62 = scmp.ne.s32.totalorder %s45, %s61
      %p63 = scmp.eq.s32.totalorder %s25, 0
      %p64 = por %p62, %p63
      %s65 = ssub.s32 %s26, %s38
      %p66 = scmp.eq.s32.totalorder %s65, 0
      %s68 = sadd.s32 %s67, 1
      %s69 = scalar_select %p66, %s67, %s68
      %p72 = pneg %p66
      %p73 = scmp.eq.s32.totalorder %s19, 3
      %p74 = por %p72, %p73
      %p75 = scmp.ne.s32.totalorder %s67, %s70
      %p76 = scmp.eq.s32.totalorder %s19, 0
      %p77 = por %p75, %p76
      %p78 = scmp.ne.s32.totalorder %s67, %s70
      %p79 = scmp.eq.s32.totalorder %s24, 3
      %p80 = por %p78, %p79
      %p81 = scmp.ne.s32.totalorder %s70, %s71
      %p82 = scmp.eq.s32.totalorder %s24, 0
      %p83 = por %p81, %p82
      %p84 = scmp.ne.s32.totalorder %s70, %s71
      %p85 = scmp.eq.s32.totalorder %s25, 3
      %p86 = por %p84, %p85
      %p88 = scmp.ne.s32.totalorder %s71, %s87
      %p89 = scmp.eq.s32.totalorder %s25, 0
      %p90 = por %p88, %p89
      %s92 = sadd.s32 %s91, 1
      %p95 = scmp.eq.s32.totalorder %s19, 3
      %p96 = scmp.ne.s32.totalorder %s91, %s93
      %p97 = scmp.eq.s32.totalorder %s19, 0
      %p98 = por %p96, %p97
      %p99 = scmp.ne.s32.totalorder %s91, %s93
      %p100 = scmp.eq.s32.totalorder %s24, 3
      %p101 = por %p99, %p100
      %p102 = scmp.ne.s32.totalorder %s93, %s94
      %p103 = scmp.eq.s32.totalorder %s24, 0
      %p104 = por %p102, %p103
      %p105 = scmp.ne.s32.totalorder %s93, %s94
      %p106 = scmp.eq.s32.totalorder %s25, 3
      %p107 = por %p105, %p106
      %p109 = scmp.ne.s32.totalorder %s94, %s108
      %p110 = scmp.eq.s32.totalorder %s25, 0
      %p111 = por %p109, %p110
      %s113 = sadd.s32 %s112, 1
      %p116 = scmp.eq.s32.totalorder %s19, 3
      %p117 = scmp.ne.s32.totalorder %s112, %s114
      %p118 = scmp.eq.s32.totalorder %s19, 0
      %p119 = por %p117, %p118
      %p120 = scmp.ne.s32.totalorder %s112, %s114
      %p121 = scmp.eq.s32.totalorder %s24, 3
      %p122 = por %p120, %p121
      %p123 = scmp.ne.s32.totalorder %s114, %s115
      %p124 = scmp.eq.s32.totalorder %s24, 0
      %p125 = por %p123, %p124
      %p126 = scmp.ne.s32.totalorder %s114, %s115
      %p127 = scmp.eq.s32.totalorder %s25, 3
      %p128 = por %p126, %p127
      %p130 = scmp.ne.s32.totalorder %s115, %s129
      %p131 = scmp.eq.s32.totalorder %s25, 0
      %p132 = por %p130, %p131
      %s134 = sadd.s32 %s133, 1
      %p137 = scmp.eq.s32.totalorder %s19, 3
      %p138 = scmp.ne.s32.totalorder %s133, %s135
      %p139 = scmp.eq.s32.totalorder %s19, 0
      %p140 = por %p138, %p139
      %p141 = scmp.ne.s32.totalorder %s133, %s135
      %p142 = scmp.eq.s32.totalorder %s24, 3
      %p143 = por %p141, %p142
      %p144 = scmp.ne.s32.totalorder %s135, %s136
      %p145 = scmp.eq.s32.totalorder %s24, 0
      %p146 = por %p144, %p145
      %p147 = scmp.ne.s32.totalorder %s135, %s136
      %p148 = scmp.eq.s32.totalorder %s25, 3
      %p149 = por %p147, %p148
      %p151 = scmp.ne.s32.totalorder %s136, %s150
      %p152 = scmp.eq.s32.totalorder %s25, 0
      %p153 = por %p151, %p152
      %s155 = sadd.s32 %s154, 1
      %p158 = scmp.eq.s32.totalorder %s19, 3
      %p159 = scmp.ne.s32.totalorder %s154, %s156
      %p160 = scmp.eq.s32.totalorder %s19, 0
      %p161 = por %p159, %p160
      %p162 = scmp.ne.s32.totalorder %s154, %s156
      %p163 = scmp.eq.s32.totalorder %s24, 3
      %p164 = por %p162, %p163
      %p165 = scmp.ne.s32.totalorder %s156, %s157
      %p166 = scmp.eq.s32.totalorder %s24, 0
      %p167 = por %p165, %p166
      %p168 = scmp.ne.s32.totalorder %s156, %s157
      %p169 = scmp.eq.s32.totalorder %s25, 3
      %p170 = por %p168, %p169
      %p172 = scmp.ne.s32.totalorder %s157, %s171
      %p173 = scmp.eq.s32.totalorder %s25, 0
      %p174 = por %p172, %p173
      %s176 = sadd.s32 %s175, 1
      %p179 = scmp.eq.s32.totalorder %s19, 3
      %p180 = scmp.ne.s32.totalorder %s175, %s177
      %p181 = scmp.eq.s32.totalorder %s19, 0
      %p182 = por %p180, %p181
      %p183 = scmp.ne.s32.totalorder %s175, %s177
      %p184 = scmp.eq.s32.totalorder %s24, 3
      %p185 = por %p183, %p184
      %p186 = scmp.ne.s32.totalorder %s177, %s178
      %p187 = scmp.eq.s32.totalorder %s24, 0
      %p188 = por %p186, %p187
      %p189 = scmp.ne.s32.totalorder %s177, %s178
      %p190 = scmp.eq.s32.totalorder %s25, 3
      %p191 = por %p189, %p190
      %p193 = scmp.ne.s32.totalorder %s178, %s192
      %p194 = scmp.eq.s32.totalorder %s25, 0
      %p195 = por %p193, %p194
      %s196 = ssub.s32 %s27, %s34
      %s197 = ssub.s32 %s26, %s38
      %s198 = sor.u32 %s196, %s197
      %p199 = scmp.eq.s32.totalorder %s198, 0
      %s201 = sadd.s32 %s200, 1
      %s202 = scalar_select %p199, %s200, %s201
      %p205 = pneg %p199
      %p206 = scmp.eq.s32.totalorder %s19, 3
      %p207 = por %p205, %p206
      %p208 = scmp.ne.s32.totalorder %s200, %s203
      %p209 = scmp.eq.s32.totalorder %s19, 0
      %p210 = por %p208, %p209
      %p211 = scmp.ne.s32.totalorder %s200, %s203
      %p212 = scmp.eq.s32.totalorder %s24, 3
      %p213 = por %p211, %p212
      %p214 = scmp.ne.s32.totalorder %s203, %s204
      %p215 = scmp.eq.s32.totalorder %s24, 0
      %p216 = por %p214, %p215
      %p217 = scmp.ne.s32.totalorder %s203, %s204
      %p218 = scmp.eq.s32.totalorder %s25, 3
      %p219 = por %p217, %p218
      %p221 = scmp.ne.s32.totalorder %s204, %s220
      %p222 = scmp.eq.s32.totalorder %s25, 0
      %p223 = por %p221, %p222
      %p224 = scmp.le.s32.totalorder 1, %s19
      %p225 = scmp.lt.s32.totalorder %s19, 5
      %p226 = pnand %p224, %p225
      %p227 = pneg %p226
      // Predicated region
      $region9: #{_nre_forward_impl.1} parent=5 // pred_check
        _
      $region10: #{_nre_forward_impl.1} parent=5 // pred_check_branch
        %229 = sbr.rel (%p226) target = $region12
      $region11: #{_nre_forward_impl.1} parent=5 // pred_region
        %s230 = ssub.s32 %s19, 1
        // Predicated region
        $region13: #{_nre_forward_impl.1} parent=11 // pred_check
          %p231 = pneg %p57
        $region14: #{_nre_forward_impl.1} parent=11 // pred_check_branch
          %233 = sbr.rel (%p231) target = $region16
        $region15: #{_nre_forward_impl.1} parent=11 // pred_region
          %p234 = scmp.lt.s32.totalorder %s28, 0
          %s235 = scalar_select %p234, %s28, 0
          %s236 = smul.addr %s235, 8
          %s237 = scalar_lea.vmem %s0, %s236
        $region16: #{_nre_forward_impl.1} parent=11 // pred_fallthru
          _
        // Predicated region
        $region17: #{_nre_forward_impl.1} parent=11 // pred_check
          %p238 = pneg %p83
        $region18: #{_nre_forward_impl.1} parent=11 // pred_check_branch
          %240 = sbr.rel (%p238) target = $region20
        $region19: #{_nre_forward_impl.1} parent=11 // pred_region
          %s241 = smul.u32 8, %s28
          %p242 = scmp.lt.s32.totalorder %s241, 7
          %s243 = scalar_select %p242, %s241, 7
          %s244 = smul.addr %s243, 8
          %s245 = scalar_lea.vmem %s1, %s244
          %s246 = smul.u32 8, %s28
        $region20: #{_nre_forward_impl.1} parent=11 // pred_fallthru
          _
        // Predicated region
        $region21: #{_nre_forward_impl.1} parent=11 // pred_check
          %p247 = pneg %p104
        $region22: #{_nre_forward_impl.1} parent=11 // pred_check_branch
          %249 = sbr.rel (%p247) target = $region24
        $region23: #{_nre_forward_impl.1} parent=11 // pred_region
          %251 = vsyncadd [#allocation5], 0
          %s252 = sshll.u32 %s2, 4
          %s253 = int_to_ptr.hbm [resolvable:$true] %s252
          %s254 = sshll.u32 [#allocation4], 4
          %s255 = int_to_ptr.vmem [resolvable:$true] %s254
          %260 = dma.hbm_to_vmem [thread:$0]  %s253, 2048, %s255, [#allocation5], 64, 64, 4
        $region24: #{_nre_forward_impl.1} parent=11 // pred_fallthru
          _
        // Predicated region
        $region25: #{_nre_forward_impl.1} parent=11 // pred_check
          %p261 = pneg %p125
        $region26: #{_nre_forward_impl.1} parent=11 // pred_check_branch
          %263 = sbr.rel (%p261) target = $region28
        $region27: #{_nre_forward_impl.1} parent=11 // pred_region
          %265 = vsyncadd [#allocation8], 0
          %s266 = sshll.u32 %s3, 4
          %s267 = int_to_ptr.hbm [resolvable:$true] %s266
          %s268 = sshll.u32 [#allocation7], 4
          %s269 = int_to_ptr.vmem [resolvable:$true] %s268
          %274 = dma.hbm_to_vmem [thread:$0]  %s267, 12288, %s269, [#allocation8], 256, 256, 16
        $region28: #{_nre_forward_impl.1} parent=11 // pred_fallthru
          _
        // Predicated region
        $region29: #{_nre_forward_impl.1} parent=11 // pred_check
          %p275 = pneg %p146
        $region30: #{_nre_forward_impl.1} parent=11 // pred_check_branch
          %277 = sbr.rel (%p275) target = $region32
        $region31: #{_nre_forward_impl.1} parent=11 // pred_region
          %279 = vsyncadd [#allocation8], 0
          %s280 = sshll.u32 %s4, 4
          %s281 = int_to_ptr.hbm [resolvable:$true] %s280
          %s282 = sshll.u32 [#allocation9], 4
          %s283 = int_to_ptr.vmem [resolvable:$true] %s282
          %288 = dma.hbm_to_vmem [thread:$0]  %s281, 1024, %s283, [#allocation8], 64, 64, 4
        $region32: #{_nre_forward_impl.1} parent=11 // pred_fallthru
          _
        // Predicated region
        $region33: #{_nre_forward_impl.1} parent=11 // pred_check
          %p289 = pneg %p167
        $region34: #{_nre_forward_impl.1} parent=11 // pred_check_branch
          %291 = sbr.rel (%p289) target = $region36
        $region35: #{_nre_forward_impl.1} parent=11 // pred_region
          %293 = vsyncadd [#allocation11], 0
          %s294 = sshll.u32 %s5, 4
          %s295 = int_to_ptr.hbm [resolvable:$true] %s294
          %s296 = sshll.u32 [#allocation10], 4
          %s297 = int_to_ptr.vmem [resolvable:$true] %s296
          %302 = dma.hbm_to_vmem [thread:$0]  %s295, 1024, %s297, [#allocation11], 64, 64, 4
        $region36: #{_nre_forward_impl.1} parent=11 // pred_fallthru
          _
        // Predicated region
        $region37: #{_nre_forward_impl.1} parent=11 // pred_check
          %p303 = pneg %p188
        $region38: #{_nre_forward_impl.1} parent=11 // pred_check_branch
          %305 = sbr.rel (%p303) target = $region40
        $region39: #{_nre_forward_impl.1} parent=11 // pred_region
          _
        $region40: #{_nre_forward_impl.1} parent=11 // pred_fallthru
          _
      $region12: #{_nre_forward_impl.1} parent=5 // pred_fallthru
        _
      %p306 = scmp.lt.s32.totalorder %s19, 4
      // Predicated region
      $region41: #{_nre_forward_impl.1} parent=5 // pred_check
        %p307 = pneg %p306
      $region42: #{_nre_forward_impl.1} parent=5 // pred_check_branch
        %309 = sbr.rel (%p307) target = $region44
      $region43: #{_nre_forward_impl.1} parent=5 // pred_region
        _
      $region44: #{_nre_forward_impl.1} parent=5 // pred_fallthru
        _
      %p310 = scmp.le.s32.totalorder 1, %s19
      %p311 = scmp.lt.s32.totalorder %s19, 5
      %p312 = pnand %p310, %p311
      %p313 = pneg %p312
      // Predicated region
      $region45: #{_nre_forward_impl.1} parent=5 // pred_check
        _
      $region46: #{_nre_forward_impl.1} parent=5 // pred_check_branch
        %315 = sbr.rel (%p312) target = $region48
      $region47: #{_nre_forward_impl.1} parent=5 // pred_region
        %s316 = ssub.s32 %s19, 1
        // Predicated region
        $region49: #{_nre_forward_impl.1} parent=47 // pred_check
          %p317 = pneg %p104
        $region50: #{_nre_forward_impl.1} parent=47 // pred_check_branch
          %319 = sbr.rel (%p317) target = $region52
        $region51: #{_nre_forward_impl.1} parent=47 // pred_region
          %321 = dma.done [#allocation5], 2048
        $region52: #{_nre_forward_impl.1} parent=47 // pred_fallthru
          _
        // Predicated region
        $region53: #{_nre_forward_impl.1} parent=47 // pred_check
          %p322 = pneg %p125
        $region54: #{_nre_forward_impl.1} parent=47 // pred_check_branch
          %324 = sbr.rel (%p322) target = $region56
        $region55: #{_nre_forward_impl.1} parent=47 // pred_region
          %326 = dma.done [#allocation8], 12288
        $region56: #{_nre_forward_impl.1} parent=47 // pred_fallthru
          _
        // Predicated region
        $region57: #{_nre_forward_impl.1} parent=47 // pred_check
          %p327 = pneg %p146
        $region58: #{_nre_forward_impl.1} parent=47 // pred_check_branch
          %329 = sbr.rel (%p327) target = $region60
        $region59: #{_nre_forward_impl.1} parent=47 // pred_region
          %331 = dma.done [#allocation8], 1024
        $region60: #{_nre_forward_impl.1} parent=47 // pred_fallthru
          _
        // Predicated region
        $region61: #{_nre_forward_impl.1} parent=47 // pred_check
          %p332 = pneg %p167
        $region62: #{_nre_forward_impl.1} parent=47 // pred_check_branch
          %334 = sbr.rel (%p332) target = $region64
        $region63: #{_nre_forward_impl.1} parent=47 // pred_region
          %336 = dma.done [#allocation11], 1024
        $region64: #{_nre_forward_impl.1} parent=47 // pred_fallthru
          _
        %p337 = scmp.lt.s32.totalorder %s28, 0
        %s338 = scalar_select %p337, %s28, 0
        %s339 = smul.addr %s338, 8
        %s340 = scalar_lea.vmem %s0, %s339
        %p341 = pneg %p57
        %p342 = pneg %p54
        %s343 = smul.u32 8, %s28
        %p344 = scmp.lt.s32.totalorder %s343, 7
        %s345 = scalar_select %p344, %s343, 7
        %s346 = smul.addr %s345, 8
        %s347 = scalar_lea.vmem %s1, %s346
        %p348 = pneg %p83
        %p349 = pneg %p80
        %p350 = pneg %p104
        %p351 = pneg %p101
        %p352 = pneg %p125
        %p353 = pneg %p122
        %p354 = pneg %p146
        %p355 = pneg %p143
        %p356 = pneg %p167
        %p357 = pneg %p164
        %p358 = pneg %p188
        %p359 = pneg %p185
        %p360 = pneg %p216
        %p361 = pneg %p213
        %s362 = sand.u32 %s203, 1
        %s363 = scalar_lea.sflag [#allocation6], %s362
        %s364 = sand.u32 %s203, 1
        %s365 = smul.addr %s364, 8
        %s366 = scalar_lea.vmem [#allocation12], %s365
        %p367 = scmp.lt.s32.totalorder %s28, 0
        %s368 = scalar_select %p367, %s28, 0
        %s369 = smul.addr %s368, 8
        %s370 = scalar_lea.vmem %s0, %s369
        %s371 = smul.u32 8, %s28
        %p372 = scmp.lt.s32.totalorder %s371, 7
        %s373 = scalar_select %p372, %s371, 7
        %s374 = smul.addr %s373, 8
        %s375 = scalar_lea.vmem %s1, %s374
        %s376 = smul.u32 8, %s28
        %v377 = vld [vmem:[%s6] sm:$0x1]
        %v378 = vld [vmem:[%s6 + $0x1] sm:$0x1]
        %v379 = vld [vmem:[%s6 + $0x2] sm:$0xf]
        %v380 = vld [vmem:[%s6 + $0x6] sm:$0x1]
        %p381 = scmp.eq.s32.totalorder %s29, 0
        // Predicated region
        $region65: #{_nre_forward_impl.1} parent=47 // pred_check
          %p382 = pneg %p381
        $region66: #{_nre_forward_impl.1} parent=47 // pred_check_branch
          %384 = sbr.rel (%p382) target = $region68
        $region67: #{_nre_forward_impl.1} parent=47 // pred_region
          %385 = vst [vmem:[#allocation2 + $0x8] sm:$0xff] 0.0
          %386 = vst [vmem:[#allocation3] sm:$0xff] 0.0
          %v387 = vld [vmem:[%s370] sm:$0xff]
          %388 = vst [vmem:[#allocation2] sm:$0xff] %v387
        $region68: #{_nre_forward_impl.1} parent=47 // pred_fallthru
          _
        %v389 = vld [vmem:[%s375] sm:$0xff]
        %v390 = vld [vmem:[%s375 + $0x8] sm:$0xff]
        %v391 = vld [vmem:[%s375 + $0x10] sm:$0xff]
        %v392 = vld [vmem:[%s375 + $0x18] sm:$0xff]
        %v393 = vld [vmem:[%s375 + $0x20] sm:$0xff]
        %v394 = vld [vmem:[%s375 + $0x28] sm:$0xff]
        %v395 = vld [vmem:[%s375 + $0x30] sm:$0xff]
        %v396 = vld [vmem:[%s375 + $0x38] sm:$0xff]
        %v397 = vld [vmem:[#allocation2 + $0x8] sm:$0xff]
        %v398 = vpack.c.bf16 %v397, %v397
        %v399 = vld [vmem:[#allocation4] sm:$0xf]
        %v400 = vld [vmem:[#allocation4 + $0x4] sm:$0xf]
        %v401 = vld [vmem:[#allocation4 + $0x8] sm:$0xf]
        %v402 = vld [vmem:[#allocation4 + $0xc] sm:$0xf]
        %v403 = vld [vmem:[#allocation4 + $0x10] sm:$0xf]
        %v404 = vld [vmem:[#allocation4 + $0x14] sm:$0xf]
        %v405 = vld [vmem:[#allocation4 + $0x18] sm:$0xf]
        %v406 = vld [vmem:[#allocation4 + $0x1c] sm:$0xf]
        %v407 = vld [vmem:[#allocation4 + $0x20] sm:$0xf]
        %v408 = vld [vmem:[#allocation4 + $0x24] sm:$0xf]
        %v409 = vld [vmem:[#allocation4 + $0x28] sm:$0xf]
        %v410 = vld [vmem:[#allocation4 + $0x2c] sm:$0xf]
        %v411 = vld [vmem:[#allocation4 + $0x30] sm:$0xf]
        %v412 = vld [vmem:[#allocation4 + $0x34] sm:$0xf]
        %v413 = vld [vmem:[#allocation4 + $0x38] sm:$0xf]
        %v414 = vld [vmem:[#allocation4 + $0x3c] sm:$0xf]
        %v431 = vunpack.c.l.b16 %v399
        %v432 = vunpack.c.l.b16 %v400
        %v433 = vunpack.c.l.b16 %v401
        %v434 = vunpack.c.l.b16 %v402
        %v435 = vunpack.c.l.b16 %v403
        %v436 = vunpack.c.l.b16 %v404
        %v437 = vunpack.c.l.b16 %v405
        %v438 = vunpack.c.l.b16 %v406
        %v439 = vunpack.c.l.b16 %v407
        %v440 = vunpack.c.l.b16 %v408
        %v441 = vunpack.c.l.b16 %v409
        %v442 = vunpack.c.l.b16 %v410
        %v443 = vunpack.c.l.b16 %v411
        %v444 = vunpack.c.l.b16 %v412
        %v445 = vunpack.c.l.b16 %v413
        %v446 = vunpack.c.l.b16 %v414
        %v447 = vpack.c.b16 %v432, %v431
        %v448 = vpack.c.b16 %v434, %v433
        %v449 = vpack.c.b16 %v436, %v435
        %v450 = vpack.c.b16 %v438, %v437
        %v451 = vpack.c.b16 %v440, %v439
        %v452 = vpack.c.b16 %v442, %v441
        %v453 = vpack.c.b16 %v444, %v443
        %v454 = vpack.c.b16 %v446, %v445
        %463 = vmatpush.bf16.msra.mxu0 %v454
        %464 = vmatpush.bf16.msra.mxu0 %v453
        %465 = vmatpush.bf16.msra.mxu0 %v452
        %466 = vmatpush.bf16.msra.mxu0 %v451
        %467 = vmatpush.bf16.msra.mxu0 %v450
        %468 = vmatpush.bf16.msra.mxu0 %v449
        %469 = vmatpush.bf16.msra.mxu0 %v448
        %470 = vmatpush.bf16.msra.mxu0 %v447
        %471 = vmatmul.bf16.gmra.mxu0 %v398
        %v472 = vpop.f32.mrf.mxu0
        %v473 = vadd.f32 0.0, %v472
        %v474 = vpop.f32.mrf.mxu0
        %475 = vdwg.mxu0
        %v476 = vpack.c.bf16 %v390, %v389
        %v477 = vpack.c.bf16 %v392, %v391
        %v478 = vpack.c.bf16 %v394, %v393
        %v479 = vpack.c.bf16 %v396, %v395
        %v480 = vld [vmem:[#allocation4 + $0x40] sm:$0xf]
        %v481 = vld [vmem:[#allocation4 + $0x44] sm:$0xf]
        %v482 = vld [vmem:[#allocation4 + $0x48] sm:$0xf]
        %v483 = vld [vmem:[#allocation4 + $0x4c] sm:$0xf]
        %v484 = vld [vmem:[#allocation4 + $0x50] sm:$0xf]
        %v485 = vld [vmem:[#allocation4 + $0x54] sm:$0xf]
        %v486 = vld [vmem:[#allocation4 + $0x58] sm:$0xf]
        %v487 = vld [vmem:[#allocation4 + $0x5c] sm:$0xf]
        %v488 = vld [vmem:[#allocation4 + $0x60] sm:$0xf]
        %v489 = vld [vmem:[#allocation4 + $0x64] sm:$0xf]
        %v490 = vld [vmem:[#allocation4 + $0x68] sm:$0xf]
        %v491 = vld [vmem:[#allocation4 + $0x6c] sm:$0xf]
        %v492 = vld [vmem:[#allocation4 + $0x70] sm:$0xf]
        %v493 = vld [vmem:[#allocation4 + $0x74] sm:$0xf]
        %v494 = vld [vmem:[#allocation4 + $0x78] sm:$0xf]
        %v495 = vld [vmem:[#allocation4 + $0x7c] sm:$0xf]
        %v512 = vunpack.c.l.b16 %v480
        %v513 = vunpack.c.l.b16 %v481
        %v514 = vunpack.c.l.b16 %v482
        %v515 = vunpack.c.l.b16 %v483
        %v516 = vunpack.c.l.b16 %v484
        %v517 = vunpack.c.l.b16 %v485
        %v518 = vunpack.c.l.b16 %v486
        %v519 = vunpack.c.l.b16 %v487
        %v520 = vunpack.c.l.b16 %v488
        %v521 = vunpack.c.l.b16 %v489
        %v522 = vunpack.c.l.b16 %v490
        %v523 = vunpack.c.l.b16 %v491
        %v524 = vunpack.c.l.b16 %v492
        %v525 = vunpack.c.l.b16 %v493
        %v526 = vunpack.c.l.b16 %v494
        %v527 = vunpack.c.l.b16 %v495
        %v528 = vpack.c.b16 %v513, %v512
        %v529 = vpack.c.b16 %v515, %v514
        %v530 = vpack.c.b16 %v517, %v516
        %v531 = vpack.c.b16 %v519, %v518
        %v532 = vpack.c.b16 %v521, %v520
        %v533 = vpack.c.b16 %v523, %v522
        %v534 = vpack.c.b16 %v525, %v524
        %v535 = vpack.c.b16 %v527, %v526
        %544 = vmatpush.bf16.msra.mxu0 %v535
        %545 = vmatpush.bf16.msra.mxu0 %v534
        %546 = vmatpush.bf16.msra.mxu0 %v533
        %547 = vmatpush.bf16.msra.mxu0 %v532
        %548 = vmatpush.bf16.msra.mxu0 %v531
        %549 = vmatpush.bf16.msra.mxu0 %v530
        %550 = vmatpush.bf16.msra.mxu0 %v529
        %551 = vmatpush.bf16.msra.mxu0 %v528
        %552 = vmatmul.bf16.gmra.mxu0 %v476
        %v553 = vpop.f32.mrf.mxu0
        %v554 = vadd.f32 0.0, %v553
        %v555 = vpop.f32.mrf.mxu0
        %v556 = vadd.f32 0.0, %v555
        %557 = vmatmul.bf16.gmra.mxu0 %v477
        %v558 = vpop.f32.mrf.mxu0
        %v559 = vadd.f32 0.0, %v558
        %v560 = vpop.f32.mrf.mxu0
        %v561 = vadd.f32 0.0, %v560
        %562 = vmatmul.bf16.gmra.mxu0 %v478
        %v563 = vpop.f32.mrf.mxu0
        %v564 = vadd.f32 0.0, %v563
        %v565 = vpop.f32.mrf.mxu0
        %v566 = vadd.f32 0.0, %v565
        %567 = vmatmul.bf16.gmra.mxu0 %v479
        %v568 = vpop.f32.mrf.mxu0
        %v569 = vadd.f32 0.0, %v568
        %v570 = vpop.f32.mrf.mxu0
        %v571 = vadd.f32 0.0, %v570
        %572 = vdwg.mxu0
        %v574 = vrot.slane %v473, 1
        %v575 = vrot.slane %v473, 2
        %v576 = vrot.slane %v473, 3
        %v577 = vrot.slane %v473, 4
        %v578 = vrot.slane %v473, 5
        %v579 = vrot.slane %v473, 6
        %v580 = vrot.slane %v473, 7
        %v581 = vperm.slane %v473, 0
        %v582 = vperm.slane %v574, 0
        %v583 = vperm.slane %v575, 0
        %v584 = vperm.slane %v576, 0
        %v585 = vperm.slane %v577, 0
        %v586 = vperm.slane %v578, 0
        %v587 = vperm.slane %v579, 0
        %v588 = vperm.slane %v580, 0
        %v597 = vadd.f32 %v554, %v581
        %v598 = vadd.f32 %v556, %v582
        %v599 = vadd.f32 %v559, %v583
        %v600 = vadd.f32 %v561, %v584
        %v601 = vadd.f32 %v564, %v585
        %v602 = vadd.f32 %v566, %v586
        %v603 = vadd.f32 %v569, %v587
        %v604 = vadd.f32 %v571, %v588
        %v606 = vperm.slane %v377, 0
        %v608 = vadd.f32 %v597, %v606
        %v609 = vadd.f32 %v598, %v606
        %v610 = vadd.f32 %v599, %v606
        %v611 = vadd.f32 %v600, %v606
        %v612 = vadd.f32 %v601, %v606
        %v613 = vadd.f32 %v602, %v606
        %v614 = vadd.f32 %v603, %v606
        %v615 = vadd.f32 %v604, %v606
        %v616 = vtanh.pop %v608
        %v617 = vtanh.pop %v609
        %v618 = vtanh.pop %v610
        %v619 = vtanh.pop %v611
        %v620 = vtanh.pop %v612
        %v621 = vtanh.pop %v613
        %v622 = vtanh.pop %v614
        %v623 = vtanh.pop %v615
        %v625 = vperm.slane %v378, 0
        %v627 = vmul.f32 %v616, %v625
        %v628 = vmul.f32 %v617, %v625
        %v629 = vmul.f32 %v618, %v625
        %v630 = vmul.f32 %v619, %v625
        %v631 = vmul.f32 %v620, %v625
        %v632 = vmul.f32 %v621, %v625
        %v633 = vmul.f32 %v622, %v625
        %v634 = vmul.f32 %v623, %v625
        %635 = vadd.xlane.f32.xlu0 %v627
        %v636 = vpop.xlane.xlu0 %635
        %637 = vadd.xlane.f32.xlu0 %v628
        %v638 = vpop.xlane.xlu0 %637
        %639 = vadd.xlane.f32.xlu0 %v629
        %v640 = vpop.xlane.xlu0 %639
        %641 = vadd.xlane.f32.xlu0 %v630
        %v642 = vpop.xlane.xlu0 %641
        %643 = vadd.xlane.f32.xlu0 %v631
        %v644 = vpop.xlane.xlu0 %643
        %645 = vadd.xlane.f32.xlu0 %v632
        %v646 = vpop.xlane.xlu0 %645
        %647 = vadd.xlane.f32.xlu0 %v633
        %v648 = vpop.xlane.xlu0 %647
        %649 = vadd.xlane.f32.xlu0 %v634
        %v650 = vpop.xlane.xlu0 %649
        %v651 = vlaneseq
        %v652 = vand.u32 %v651, 127
        %vm653 = vcmp.lt.s32.totalorder %v652, 7
        %v662 = vperm.slane %v636, %v652
        %v663 = vperm.slane %v638, %v652
        %v664 = vperm.slane %v640, %v652
        %v665 = vperm.slane %v642, %v652
        %v666 = vperm.slane %v644, %v652
        %v667 = vperm.slane %v646, %v652
        %v668 = vperm.slane %v648, %v652
        %v669 = vperm.slane %v650, %v652
        %vm670 = vcmask 1041409
        %v671 = vsel %vm670, %v663, %v662
        %vm672 = vcmask 1042434
        %v673 = vsel %vm672, %v664, %v671
        %vm674 = vcmask 1043459
        %v675 = vsel %vm674, %v665, %v673
        %vm676 = vcmask 1044484
        %v677 = vsel %vm676, %v666, %v675
        %vm678 = vcmask 1045509
        %v679 = vsel %vm678, %v667, %v677
        %vm680 = vcmask 1046534
        %v681 = vsel %vm680, %v668, %v679
        %vm682 = vcmask 1047559
        %v683 = vsel %vm682, %v669, %v681
        %v685 = vsel %vm653, %v683, -1e+30
        %vm686 = vcmask 64512
        %v687 = vsel %vm686, %v685, -inf
        %688 = vmax.xlane.f32.xlu0 %v687
        %v689 = vpop.xlane.xlu0 %688
        %v690 = vsub.f32 %v685, %v689
        %v691 = vmul.f32 %v690, 1.442695
        %v692 = vpow.pop %v691
        %v693 = vsel %vm686, %v692, 0.0
        %694 = vadd.xlane.f32.xlu0 %v693
        %v695 = vpop.xlane.xlu0 %694
        %v696 = vrcp.pop %v695
        %v697 = vmul.f32 %v695, %v696
        %v698 = vsub.f32 1.0, %v697
        %v699 = vmul.f32 %v696, %v698
        %v700 = vadd.f32 %v696, %v699
        %vm701 = vweird.f32 %v695
        %vm702 = vweird.f32 %v696
        %vm703 = vmor %vm701, %vm702
        %v704 = vsel %vm703, %v696, %v700
        %v705 = vand.u32 2147483647, %v695
        %vm706 = vcmp.eq.f32.partialorder %v705, 8.507059e+37
        %v707 = vand.u32 %v695, 2147483648
        %v708 = vor.u32 1.1754944e-38, %v707
        %v709 = vsel %vm706, %v708, %v704
        %v710 = vmul.f32 %v692, %v709
        %v711 = vperm.slane %v710, 0
        %v712 = vlaneseq
        %v713 = vshrl.u32 %v712, 7
        %715 = vset.pattern.permute.xlu0 %v713
        %716 = vperm.xlu0 %715, %v711
        %v717 = vpop.permute.xlu0 %716
        %v718 = vperm.slane %v710, 1
        %v719 = vlaneseq
        %v720 = vshrl.u32 %v719, 7
        %722 = vset.pattern.permute.xlu0 %v720
        %723 = vperm.xlu0 %722, %v718
        %v724 = vpop.permute.xlu0 %723
        %v725 = vperm.slane %v710, 2
        %v726 = vlaneseq
        %v727 = vshrl.u32 %v726, 7
        %729 = vset.pattern.permute.xlu0 %v727
        %730 = vperm.xlu0 %729, %v725
        %v731 = vpop.permute.xlu0 %730
        %v732 = vperm.slane %v710, 3
        %v733 = vlaneseq
        %v734 = vshrl.u32 %v733, 7
        %736 = vset.pattern.permute.xlu0 %v734
        %737 = vperm.xlu0 %736, %v732
        %v738 = vpop.permute.xlu0 %737
        %v739 = vperm.slane %v710, 4
        %v740 = vlaneseq
        %v741 = vshrl.u32 %v740, 7
        %743 = vset.pattern.permute.xlu0 %v741
        %744 = vperm.xlu0 %743, %v739
        %v745 = vpop.permute.xlu0 %744
        %v746 = vperm.slane %v710, 5
        %v747 = vlaneseq
        %v748 = vshrl.u32 %v747, 7
        %750 = vset.pattern.permute.xlu0 %v748
        %751 = vperm.xlu0 %750, %v746
        %v752 = vpop.permute.xlu0 %751
        %v753 = vperm.slane %v710, 6
        %v754 = vlaneseq
        %v755 = vshrl.u32 %v754, 7
        %757 = vset.pattern.permute.xlu0 %v755
        %758 = vperm.xlu0 %757, %v753
        %v759 = vpop.permute.xlu0 %758
        %v760 = vperm.slane %v710, 7
        %v761 = vlaneseq
        %v762 = vshrl.u32 %v761, 7
        %764 = vset.pattern.permute.xlu0 %v762
        %765 = vperm.xlu0 %764, %v760
        %v766 = vpop.permute.xlu0 %765
        %v767 = vmul.f32 %v717, %v389
        %v768 = vmul.f32 %v724, %v390
        %v769 = vmul.f32 %v731, %v391
        %v770 = vmul.f32 %v738, %v392
        %v771 = vmul.f32 %v745, %v393
        %v772 = vmul.f32 %v752, %v394
        %v773 = vmul.f32 %v759, %v395
        %v774 = vmul.f32 %v766, %v396
        %v775 = vrot.slane %v767, 4
        %v776 = vadd.f32 %v767, %v775
        %v777 = vrot.slane %v776, 2
        %v778 = vadd.f32 %v776, %v777
        %v779 = vrot.slane %v778, 1
        %v780 = vadd.f32 %v778, %v779
        %v781 = vrot.slane %v768, 4
        %v782 = vadd.f32 %v768, %v781
        %v783 = vrot.slane %v782, 2
        %v784 = vadd.f32 %v782, %v783
        %v785 = vrot.slane %v784, 1
        %v786 = vadd.f32 %v784, %v785
        %v787 = vrot.slane %v769, 4
        %v788 = vadd.f32 %v769, %v787
        %v789 = vrot.slane %v788, 2
        %v790 = vadd.f32 %v788, %v789
        %v791 = vrot.slane %v790, 1
        %v792 = vadd.f32 %v790, %v791
        %v793 = vrot.slane %v770, 4
        %v794 = vadd.f32 %v770, %v793
        %v795 = vrot.slane %v794, 2
        %v796 = vadd.f32 %v794, %v795
        %v797 = vrot.slane %v796, 1
        %v798 = vadd.f32 %v796, %v797
        %v799 = vrot.slane %v771, 4
        %v800 = vadd.f32 %v771, %v799
        %v801 = vrot.slane %v800, 2
        %v802 = vadd.f32 %v800, %v801
        %v803 = vrot.slane %v802, 1
        %v804 = vadd.f32 %v802, %v803
        %v805 = vrot.slane %v772, 4
        %v806 = vadd.f32 %v772, %v805
        %v807 = vrot.slane %v806, 2
        %v808 = vadd.f32 %v806, %v807
        %v809 = vrot.slane %v808, 1
        %v810 = vadd.f32 %v808, %v809
        %v811 = vrot.slane %v773, 4
        %v812 = vadd.f32 %v773, %v811
        %v813 = vrot.slane %v812, 2
        %v814 = vadd.f32 %v812, %v813
        %v815 = vrot.slane %v814, 1
        %v816 = vadd.f32 %v814, %v815
        %v817 = vrot.slane %v774, 4
        %v818 = vadd.f32 %v774, %v817
        %v819 = vrot.slane %v818, 2
        %v820 = vadd.f32 %v818, %v819
        %v821 = vrot.slane %v820, 1
        %v822 = vadd.f32 %v820, %v821
        %v823 = vld [vmem:[#allocation2] sm:$0xff]
        %v824 = vpack.c.bf16 %v823, %v823
        %v825 = vld [vmem:[#allocation7] sm:$0xff]
        %v826 = vld [vmem:[#allocation7 + $0x8] sm:$0xff]
        %v827 = vld [vmem:[#allocation7 + $0x10] sm:$0xff]
        %v828 = vld [vmem:[#allocation7 + $0x18] sm:$0xff]
        %v829 = vld [vmem:[#allocation7 + $0x20] sm:$0xff]
        %v830 = vld [vmem:[#allocation7 + $0x28] sm:$0xff]
        %v831 = vld [vmem:[#allocation7 + $0x30] sm:$0xff]
        %v832 = vld [vmem:[#allocation7 + $0x38] sm:$0xff]
        %v833 = vld [vmem:[#allocation7 + $0x40] sm:$0xff]
        %v834 = vld [vmem:[#allocation7 + $0x48] sm:$0xff]
        %v835 = vld [vmem:[#allocation7 + $0x50] sm:$0xff]
        %v836 = vld [vmem:[#allocation7 + $0x58] sm:$0xff]
        %v837 = vld [vmem:[#allocation7 + $0x60] sm:$0xff]
        %v838 = vld [vmem:[#allocation7 + $0x68] sm:$0xff]
        %v839 = vld [vmem:[#allocation7 + $0x70] sm:$0xff]
        %v840 = vld [vmem:[#allocation7 + $0x78] sm:$0xff]
        %v841 = vld [vmem:[#allocation7 + $0x80] sm:$0xff]
        %v842 = vld [vmem:[#allocation7 + $0x88] sm:$0xff]
        %v843 = vld [vmem:[#allocation7 + $0x90] sm:$0xff]
        %v844 = vld [vmem:[#allocation7 + $0x98] sm:$0xff]
        %v845 = vld [vmem:[#allocation7 + $0xa0] sm:$0xff]
        %v846 = vld [vmem:[#allocation7 + $0xa8] sm:$0xff]
        %v847 = vld [vmem:[#allocation7 + $0xb0] sm:$0xff]
        %v848 = vld [vmem:[#allocation7 + $0xb8] sm:$0xff]
        %v849 = vld [vmem:[#allocation7 + $0xc0] sm:$0xff]
        %v850 = vld [vmem:[#allocation7 + $0xc8] sm:$0xff]
        %v851 = vld [vmem:[#allocation7 + $0xd0] sm:$0xff]
        %v852 = vld [vmem:[#allocation7 + $0xd8] sm:$0xff]
        %v853 = vld [vmem:[#allocation7 + $0xe0] sm:$0xff]
        %v854 = vld [vmem:[#allocation7 + $0xe8] sm:$0xff]
        %v855 = vld [vmem:[#allocation7 + $0xf0] sm:$0xff]
        %v856 = vld [vmem:[#allocation7 + $0xf8] sm:$0xff]
        %v857 = vld [vmem:[#allocation7 + $0x100] sm:$0xff]
        %v858 = vld [vmem:[#allocation7 + $0x108] sm:$0xff]
        %v859 = vld [vmem:[#allocation7 + $0x110] sm:$0xff]
        %v860 = vld [vmem:[#allocation7 + $0x118] sm:$0xff]
        %v861 = vld [vmem:[#allocation7 + $0x120] sm:$0xff]
        %v862 = vld [vmem:[#allocation7 + $0x128] sm:$0xff]
        %v863 = vld [vmem:[#allocation7 + $0x130] sm:$0xff]
        %v864 = vld [vmem:[#allocation7 + $0x138] sm:$0xff]
        %v865 = vld [vmem:[#allocation7 + $0x140] sm:$0xff]
        %v866 = vld [vmem:[#allocation7 + $0x148] sm:$0xff]
        %v867 = vld [vmem:[#allocation7 + $0x150] sm:$0xff]
        %v868 = vld [vmem:[#allocation7 + $0x158] sm:$0xff]
        %v869 = vld [vmem:[#allocation7 + $0x160] sm:$0xff]
        %v870 = vld [vmem:[#allocation7 + $0x168] sm:$0xff]
        %v871 = vld [vmem:[#allocation7 + $0x170] sm:$0xff]
        %v872 = vld [vmem:[#allocation7 + $0x178] sm:$0xff]
        %v873 = vld [vmem:[#allocation7 + $0x180] sm:$0xff]
        %v874 = vld [vmem:[#allocation7 + $0x188] sm:$0xff]
        %v875 = vld [vmem:[#allocation7 + $0x190] sm:$0xff]
        %v876 = vld [vmem:[#allocation7 + $0x198] sm:$0xff]
        %v877 = vld [vmem:[#allocation7 + $0x1a0] sm:$0xff]
        %v878 = vld [vmem:[#allocation7 + $0x1a8] sm:$0xff]
        %v879 = vld [vmem:[#allocation7 + $0x1b0] sm:$0xff]
        %v880 = vld [vmem:[#allocation7 + $0x1b8] sm:$0xff]
        %v881 = vld [vmem:[#allocation7 + $0x1c0] sm:$0xff]
        %v882 = vld [vmem:[#allocation7 + $0x1c8] sm:$0xff]
        %v883 = vld [vmem:[#allocation7 + $0x1d0] sm:$0xff]
        %v884 = vld [vmem:[#allocation7 + $0x1d8] sm:$0xff]
        %v885 = vld [vmem:[#allocation7 + $0x1e0] sm:$0xff]
        %v886 = vld [vmem:[#allocation7 + $0x1e8] sm:$0xff]
        %v887 = vld [vmem:[#allocation7 + $0x1f0] sm:$0xff]
        %v888 = vld [vmem:[#allocation7 + $0x1f8] sm:$0xff]
        %v889 = vpack.c.bf16 %v780, %v780
        %v890 = vpack.c.bf16 %v786, %v786
        %v891 = vpack.c.bf16 %v792, %v792
        %v892 = vpack.c.bf16 %v798, %v798
        %v893 = vpack.c.bf16 %v804, %v804
        %v894 = vpack.c.bf16 %v810, %v810
        %v895 = vpack.c.bf16 %v816, %v816
        %v896 = vpack.c.bf16 %v822, %v822
        %v897 = vld [vmem:[#allocation7 + $0x200] sm:$0xff]
        %v898 = vld [vmem:[#allocation7 + $0x208] sm:$0xff]
        %v899 = vld [vmem:[#allocation7 + $0x210] sm:$0xff]
        %v900 = vld [vmem:[#allocation7 + $0x218] sm:$0xff]
        %v901 = vld [vmem:[#allocation7 + $0x220] sm:$0xff]
        %v902 = vld [vmem:[#allocation7 + $0x228] sm:$0xff]
        %v903 = vld [vmem:[#allocation7 + $0x230] sm:$0xff]
        %v904 = vld [vmem:[#allocation7 + $0x238] sm:$0xff]
        %v905 = vld [vmem:[#allocation7 + $0x240] sm:$0xff]
        %v906 = vld [vmem:[#allocation7 + $0x248] sm:$0xff]
        %v907 = vld [vmem:[#allocation7 + $0x250] sm:$0xff]
        %v908 = vld [vmem:[#allocation7 + $0x258] sm:$0xff]
        %v909 = vld [vmem:[#allocation7 + $0x260] sm:$0xff]
        %v910 = vld [vmem:[#allocation7 + $0x268] sm:$0xff]
        %v911 = vld [vmem:[#allocation7 + $0x270] sm:$0xff]
        %v912 = vld [vmem:[#allocation7 + $0x278] sm:$0xff]
        %v913 = vld [vmem:[#allocation7 + $0x280] sm:$0xff]
        %v914 = vld [vmem:[#allocation7 + $0x288] sm:$0xff]
        %v915 = vld [vmem:[#allocation7 + $0x290] sm:$0xff]
        %v916 = vld [vmem:[#allocation7 + $0x298] sm:$0xff]
        %v917 = vld [vmem:[#allocation7 + $0x2a0] sm:$0xff]
        %v918 = vld [vmem:[#allocation7 + $0x2a8] sm:$0xff]
        %v919 = vld [vmem:[#allocation7 + $0x2b0] sm:$0xff]
        %v920 = vld [vmem:[#allocation7 + $0x2b8] sm:$0xff]
        %v921 = vld [vmem:[#allocation7 + $0x2c0] sm:$0xff]
        %v922 = vld [vmem:[#allocation7 + $0x2c8] sm:$0xff]
        %v923 = vld [vmem:[#allocation7 + $0x2d0] sm:$0xff]
        %v924 = vld [vmem:[#allocation7 + $0x2d8] sm:$0xff]
        %v925 = vld [vmem:[#allocation7 + $0x2e0] sm:$0xff]
        %v926 = vld [vmem:[#allocation7 + $0x2e8] sm:$0xff]
        %v927 = vld [vmem:[#allocation7 + $0x2f0] sm:$0xff]
        %v928 = vld [vmem:[#allocation7 + $0x2f8] sm:$0xff]
        %v937 = vunpack.c.l.b16 %v889
        %v938 = vunpack.c.l.b16 %v890
        %v939 = vunpack.c.l.b16 %v891
        %v940 = vunpack.c.l.b16 %v892
        %v941 = vunpack.c.l.b16 %v893
        %v942 = vunpack.c.l.b16 %v894
        %v943 = vunpack.c.l.b16 %v895
        %v944 = vunpack.c.l.b16 %v896
        %v945 = vsel %vm670, %v938, %v937
        %v946 = vsel %vm672, %v939, %v945
        %v947 = vsel %vm674, %v940, %v946
        %v948 = vsel %vm676, %v941, %v947
        %v949 = vsel %vm678, %v942, %v948
        %v950 = vsel %vm680, %v943, %v949
        %v951 = vsel %vm682, %v944, %v950
        %v952 = vpack.c.b16 %v951, %v951
        %v986 = vunpack.c.l.b16 %v897
        %v987 = vunpack.c.h.b16 %v897
        %v988 = vunpack.c.l.b16 %v898
        %v989 = vunpack.c.h.b16 %v898
        %v990 = vunpack.c.l.b16 %v899
        %v991 = vunpack.c.h.b16 %v899
        %v992 = vunpack.c.l.b16 %v900
        %v993 = vunpack.c.h.b16 %v900
        %v994 = vunpack.c.l.b16 %v901
        %v995 = vunpack.c.h.b16 %v901
        %v996 = vunpack.c.l.b16 %v902
        %v997 = vunpack.c.h.b16 %v902
        %v998 = vunpack.c.l.b16 %v903
        %v999 = vunpack.c.h.b16 %v903
        %v1000 = vunpack.c.l.b16 %v904
        %v1001 = vunpack.c.h.b16 %v904
        %v1002 = vunpack.c.l.b16 %v905
        %v1003 = vunpack.c.h.b16 %v905
        %v1004 = vunpack.c.l.b16 %v906
        %v1005 = vunpack.c.h.b16 %v906
        %v1006 = vunpack.c.l.b16 %v907
        %v1007 = vunpack.c.h.b16 %v907
        %v1008 = vunpack.c.l.b16 %v908
        %v1009 = vunpack.c.h.b16 %v908
        %v1010 = vunpack.c.l.b16 %v909
        %v1011 = vunpack.c.h.b16 %v909
        %v1012 = vunpack.c.l.b16 %v910
        %v1013 = vunpack.c.h.b16 %v910
        %v1014 = vunpack.c.l.b16 %v911
        %v1015 = vunpack.c.h.b16 %v911
        %v1016 = vunpack.c.l.b16 %v912
        %v1017 = vunpack.c.h.b16 %v912
        %v1018 = vunpack.c.l.b16 %v913
        %v1019 = vunpack.c.h.b16 %v913
        %v1020 = vunpack.c.l.b16 %v914
        %v1021 = vunpack.c.h.b16 %v914
        %v1022 = vunpack.c.l.b16 %v915
        %v1023 = vunpack.c.h.b16 %v915
        %v1024 = vunpack.c.l.b16 %v916
        %v1025 = vunpack.c.h.b16 %v916
        %v1026 = vunpack.c.l.b16 %v917
        %v1027 = vunpack.c.h.b16 %v917
        %v1028 = vunpack.c.l.b16 %v918
        %v1029 = vunpack.c.h.b16 %v918
        %v1030 = vunpack.c.l.b16 %v919
        %v1031 = vunpack.c.h.b16 %v919
        %v1032 = vunpack.c.l.b16 %v920
        %v1033 = vunpack.c.h.b16 %v920
        %v1034 = vunpack.c.l.b16 %v921
        %v1035 = vunpack.c.h.b16 %v921
        %v1036 = vunpack.c.l.b16 %v922
        %v1037 = vunpack.c.h.b16 %v922
        %v1038 = vunpack.c.l.b16 %v923
        %v1039 = vunpack.c.h.b16 %v923
        %v1040 = vunpack.c.l.b16 %v924
        %v1041 = vunpack.c.h.b16 %v924
        %v1042 = vunpack.c.l.b16 %v925
        %v1043 = vunpack.c.h.b16 %v925
        %v1044 = vunpack.c.l.b16 %v926
        %v1045 = vunpack.c.h.b16 %v926
        %v1046 = vunpack.c.l.b16 %v927
        %v1047 = vunpack.c.h.b16 %v927
        %v1048 = vunpack.c.l.b16 %v928
        %v1049 = vunpack.c.h.b16 %v928
        %v1050 = vpack.c.b16 %v990, %v986
        %v1051 = vpack.c.b16 %v991, %v987
        %v1052 = vpack.c.b16 %v992, %v988
        %v1053 = vpack.c.b16 %v993, %v989
        %v1054 = vpack.c.b16 %v998, %v994
        %v1055 = vpack.c.b16 %v999, %v995
        %v1056 = vpack.c.b16 %v1000, %v996
        %v1057 = vpack.c.b16 %v1001, %v997
        %v1058 = vpack.c.b16 %v1006, %v1002
        %v1059 = vpack.c.b16 %v1007, %v1003
        %v1060 = vpack.c.b16 %v1008, %v1004
        %v1061 = vpack.c.b16 %v1009, %v1005
        %v1062 = vpack.c.b16 %v1014, %v1010
        %v1063 = vpack.c.b16 %v1015, %v1011
        %v1064 = vpack.c.b16 %v1016, %v1012
        %v1065 = vpack.c.b16 %v1017, %v1013
        %v1066 = vpack.c.b16 %v1022, %v1018
        %v1067 = vpack.c.b16 %v1023, %v1019
        %v1068 = vpack.c.b16 %v1024, %v1020
        %v1069 = vpack.c.b16 %v1025, %v1021
        %v1070 = vpack.c.b16 %v1030, %v1026
        %v1071 = vpack.c.b16 %v1031, %v1027
        %v1072 = vpack.c.b16 %v1032, %v1028
        %v1073 = vpack.c.b16 %v1033, %v1029
        %v1074 = vpack.c.b16 %v1038, %v1034
        %v1075 = vpack.c.b16 %v1039, %v1035
        %v1076 = vpack.c.b16 %v1040, %v1036
        %v1077 = vpack.c.b16 %v1041, %v1037
        %v1078 = vpack.c.b16 %v1046, %v1042
        %v1079 = vpack.c.b16 %v1047, %v1043
        %v1080 = vpack.c.b16 %v1048, %v1044
        %v1081 = vpack.c.b16 %v1049, %v1045
        %1114 = vmatpush.bf16.msra.mxu0 %v1078
        %1115 = vmatpush.bf16.msra.mxu0 %v1074
        %1116 = vmatpush.bf16.msra.mxu0 %v1070
        %1117 = vmatpush.bf16.msra.mxu0 %v1066
        %1118 = vmatpush.bf16.msra.mxu0 %v1062
        %1119 = vmatpush.bf16.msra.mxu0 %v1058
        %1120 = vmatpush.bf16.msra.mxu0 %v1054
        %1121 = vmatpush.bf16.msra.mxu0 %v1050
        %1122 = vmatmul.bf16.gmra.mxu0 %v952
        %v1123 = vpop.f32.mrf.mxu0
        %v1124 = vadd.f32 0.0, %v1123
        %v1125 = vpop.f32.mrf.mxu0
        %1126 = vdwg.mxu0
        %1127 = vmatpush.bf16.msra.mxu0 %v1079
        %1128 = vmatpush.bf16.msra.mxu0 %v1075
        %1129 = vmatpush.bf16.msra.mxu0 %v1071
        %1130 = vmatpush.bf16.msra.mxu0 %v1067
        %1131 = vmatpush.bf16.msra.mxu0 %v1063
        %1132 = vmatpush.bf16.msra.mxu0 %v1059
        %1133 = vmatpush.bf16.msra.mxu0 %v1055
        %1134 = vmatpush.bf16.msra.mxu0 %v1051
        %1135 = vmatmul.bf16.gmra.mxu0 %v952
        %v1136 = vpop.f32.mrf.mxu0
        %v1137 = vadd.f32 0.0, %v1136
        %v1138 = vpop.f32.mrf.mxu0
        %1139 = vdwg.mxu0
        %1140 = vmatpush.bf16.msra.mxu0 %v1080
        %1141 = vmatpush.bf16.msra.mxu0 %v1076
        %1142 = vmatpush.bf16.msra.mxu0 %v1072
        %1143 = vmatpush.bf16.msra.mxu0 %v1068
        %1144 = vmatpush.bf16.msra.mxu0 %v1064
        %1145 = vmatpush.bf16.msra.mxu0 %v1060
        %1146 = vmatpush.bf16.msra.mxu0 %v1056
        %1147 = vmatpush.bf16.msra.mxu0 %v1052
        %1148 = vmatmul.bf16.gmra.mxu0 %v952
        %v1149 = vpop.f32.mrf.mxu0
        %v1150 = vadd.f32 0.0, %v1149
        %v1151 = vpop.f32.mrf.mxu0
        %1152 = vdwg.mxu0
        %1153 = vmatpush.bf16.msra.mxu0 %v1081
        %1154 = vmatpush.bf16.msra.mxu0 %v1077
        %1155 = vmatpush.bf16.msra.mxu0 %v1073
        %1156 = vmatpush.bf16.msra.mxu0 %v1069
        %1157 = vmatpush.bf16.msra.mxu0 %v1065
        %1158 = vmatpush.bf16.msra.mxu0 %v1061
        %1159 = vmatpush.bf16.msra.mxu0 %v1057
        %1160 = vmatpush.bf16.msra.mxu0 %v1053
        %1161 = vmatmul.bf16.gmra.mxu0 %v952
        %v1162 = vpop.f32.mrf.mxu0
        %v1163 = vadd.f32 0.0, %v1162
        %v1164 = vpop.f32.mrf.mxu0
        %1165 = vdwg.mxu0
        %v1230 = vunpack.c.l.b16 %v825
        %v1231 = vunpack.c.h.b16 %v825
        %v1232 = vunpack.c.l.b16 %v826
        %v1233 = vunpack.c.h.b16 %v826
        %v1234 = vunpack.c.l.b16 %v827
        %v1235 = vunpack.c.h.b16 %v827
        %v1236 = vunpack.c.l.b16 %v828
        %v1237 = vunpack.c.h.b16 %v828
        %v1238 = vunpack.c.l.b16 %v829
        %v1239 = vunpack.c.h.b16 %v829
        %v1240 = vunpack.c.l.b16 %v830
        %v1241 = vunpack.c.h.b16 %v830
        %v1242 = vunpack.c.l.b16 %v831
        %v1243 = vunpack.c.h.b16 %v831
        %v1244 = vunpack.c.l.b16 %v832
        %v1245 = vunpack.c.h.b16 %v832
        %v1246 = vunpack.c.l.b16 %v833
        %v1247 = vunpack.c.h.b16 %v833
        %v1248 = vunpack.c.l.b16 %v834
        %v1249 = vunpack.c.h.b16 %v834
        %v1250 = vunpack.c.l.b16 %v835
        %v1251 = vunpack.c.h.b16 %v835
        %v1252 = vunpack.c.l.b16 %v836
        %v1253 = vunpack.c.h.b16 %v836
        %v1254 = vunpack.c.l.b16 %v837
        %v1255 = vunpack.c.h.b16 %v837
        %v1256 = vunpack.c.l.b16 %v838
        %v1257 = vunpack.c.h.b16 %v838
        %v1258 = vunpack.c.l.b16 %v839
        %v1259 = vunpack.c.h.b16 %v839
        %v1260 = vunpack.c.l.b16 %v840
        %v1261 = vunpack.c.h.b16 %v840
        %v1262 = vunpack.c.l.b16 %v841
        %v1263 = vunpack.c.h.b16 %v841
        %v1264 = vunpack.c.l.b16 %v842
        %v1265 = vunpack.c.h.b16 %v842
        %v1266 = vunpack.c.l.b16 %v843
        %v1267 = vunpack.c.h.b16 %v843
        %v1268 = vunpack.c.l.b16 %v844
        %v1269 = vunpack.c.h.b16 %v844
        %v1270 = vunpack.c.l.b16 %v845
        %v1271 = vunpack.c.h.b16 %v845
        %v1272 = vunpack.c.l.b16 %v846
        %v1273 = vunpack.c.h.b16 %v846
        %v1274 = vunpack.c.l.b16 %v847
        %v1275 = vunpack.c.h.b16 %v847
        %v1276 = vunpack.c.l.b16 %v848
        %v1277 = vunpack.c.h.b16 %v848
        %v1278 = vunpack.c.l.b16 %v849
        %v1279 = vunpack.c.h.b16 %v849
        %v1280 = vunpack.c.l.b16 %v850
        %v1281 = vunpack.c.h.b16 %v850
        %v1282 = vunpack.c.l.b16 %v851
        %v1283 = vunpack.c.h.b16 %v851
        %v1284 = vunpack.c.l.b16 %v852
        %v1285 = vunpack.c.h.b16 %v852
        %v1286 = vunpack.c.l.b16 %v853
        %v1287 = vunpack.c.h.b16 %v853
        %v1288 = vunpack.c.l.b16 %v854
        %v1289 = vunpack.c.h.b16 %v854
        %v1290 = vunpack.c.l.b16 %v855
        %v1291 = vunpack.c.h.b16 %v855
        %v1292 = vunpack.c.l.b16 %v856
        %v1293 = vunpack.c.h.b16 %v856
        %v1294 = vunpack.c.l.b16 %v857
        %v1295 = vunpack.c.h.b16 %v857
        %v1296 = vunpack.c.l.b16 %v858
        %v1297 = vunpack.c.h.b16 %v858
        %v1298 = vunpack.c.l.b16 %v859
        %v1299 = vunpack.c.h.b16 %v859
        %v1300 = vunpack.c.l.b16 %v860
        %v1301 = vunpack.c.h.b16 %v860
        %v1302 = vunpack.c.l.b16 %v861
        %v1303 = vunpack.c.h.b16 %v861
        %v1304 = vunpack.c.l.b16 %v862
        %v1305 = vunpack.c.h.b16 %v862
        %v1306 = vunpack.c.l.b16 %v863
        %v1307 = vunpack.c.h.b16 %v863
        %v1308 = vunpack.c.l.b16 %v864
        %v1309 = vunpack.c.h.b16 %v864
        %v1310 = vunpack.c.l.b16 %v865
        %v1311 = vunpack.c.h.b16 %v865
        %v1312 = vunpack.c.l.b16 %v866
        %v1313 = vunpack.c.h.b16 %v866
        %v1314 = vunpack.c.l.b16 %v867
        %v1315 = vunpack.c.h.b16 %v867
        %v1316 = vunpack.c.l.b16 %v868
        %v1317 = vunpack.c.h.b16 %v868
        %v1318 = vunpack.c.l.b16 %v869
        %v1319 = vunpack.c.h.b16 %v869
        %v1320 = vunpack.c.l.b16 %v870
        %v1321 = vunpack.c.h.b16 %v870
        %v1322 = vunpack.c.l.b16 %v871
        %v1323 = vunpack.c.h.b16 %v871
        %v1324 = vunpack.c.l.b16 %v872
        %v1325 = vunpack.c.h.b16 %v872
        %v1326 = vunpack.c.l.b16 %v873
        %v1327 = vunpack.c.h.b16 %v873
        %v1328 = vunpack.c.l.b16 %v874
        %v1329 = vunpack.c.h.b16 %v874
        %v1330 = vunpack.c.l.b16 %v875
        %v1331 = vunpack.c.h.b16 %v875
        %v1332 = vunpack.c.l.b16 %v876
        %v1333 = vunpack.c.h.b16 %v876
        %v1334 = vunpack.c.l.b16 %v877
        %v1335 = vunpack.c.h.b16 %v877
        %v1336 = vunpack.c.l.b16 %v878
        %v1337 = vunpack.c.h.b16 %v878
        %v1338 = vunpack.c.l.b16 %v879
        %v1339 = vunpack.c.h.b16 %v879
        %v1340 = vunpack.c.l.b16 %v880
        %v1341 = vunpack.c.h.b16 %v880
        %v1342 = vunpack.c.l.b16 %v881
        %v1343 = vunpack.c.h.b16 %v881
        %v1344 = vunpack.c.l.b16 %v882
        %v1345 = vunpack.c.h.b16 %v882
        %v1346 = vunpack.c.l.b16 %v883
        %v1347 = vunpack.c.h.b16 %v883
        %v1348 = vunpack.c.l.b16 %v884
        %v1349 = vunpack.c.h.b16 %v884
        %v1350 = vunpack.c.l.b16 %v885
        %v1351 = vunpack.c.h.b16 %v885
        %v1352 = vunpack.c.l.b16 %v886
        %v1353 = vunpack.c.h.b16 %v886
        %v1354 = vunpack.c.l.b16 %v887
        %v1355 = vunpack.c.h.b16 %v887
        %v1356 = vunpack.c.l.b16 %v888
        %v1357 = vunpack.c.h.b16 %v888
        %v1358 = vpack.c.b16 %v1234, %v1230
        %v1359 = vpack.c.b16 %v1235, %v1231
        %v1360 = vpack.c.b16 %v1236, %v1232
        %v1361 = vpack.c.b16 %v1237, %v1233
        %v1362 = vpack.c.b16 %v1242, %v1238
        %v1363 = vpack.c.b16 %v1243, %v1239
        %v1364 = vpack.c.b16 %v1244, %v1240
        %v1365 = vpack.c.b16 %v1245, %v1241
        %v1366 = vpack.c.b16 %v1250, %v1246
        %v1367 = vpack.c.b16 %v1251, %v1247
        %v1368 = vpack.c.b16 %v1252, %v1248
        %v1369 = vpack.c.b16 %v1253, %v1249
        %v1370 = vpack.c.b16 %v1258, %v1254
        %v1371 = vpack.c.b16 %v1259, %v1255
        %v1372 = vpack.c.b16 %v1260, %v1256
        %v1373 = vpack.c.b16 %v1261, %v1257
        %v1374 = vpack.c.b16 %v1266, %v1262
        %v1375 = vpack.c.b16 %v1267, %v1263
        %v1376 = vpack.c.b16 %v1268, %v1264
        %v1377 = vpack.c.b16 %v1269, %v1265
        %v1378 = vpack.c.b16 %v1274, %v1270
        %v1379 = vpack.c.b16 %v1275, %v1271
        %v1380 = vpack.c.b16 %v1276, %v1272
        %v1381 = vpack.c.b16 %v1277, %v1273
        %v1382 = vpack.c.b16 %v1282, %v1278
        %v1383 = vpack.c.b16 %v1283, %v1279
        %v1384 = vpack.c.b16 %v1284, %v1280
        %v1385 = vpack.c.b16 %v1285, %v1281
        %v1386 = vpack.c.b16 %v1290, %v1286
        %v1387 = vpack.c.b16 %v1291, %v1287
        %v1388 = vpack.c.b16 %v1292, %v1288
        %v1389 = vpack.c.b16 %v1293, %v1289
        %v1390 = vpack.c.b16 %v1298, %v1294
        %v1391 = vpack.c.b16 %v1299, %v1295
        %v1392 = vpack.c.b16 %v1300, %v1296
        %v1393 = vpack.c.b16 %v1301, %v1297
        %v1394 = vpack.c.b16 %v1306, %v1302
        %v1395 = vpack.c.b16 %v1307, %v1303
        %v1396 = vpack.c.b16 %v1308, %v1304
        %v1397 = vpack.c.b16 %v1309, %v1305
        %v1398 = vpack.c.b16 %v1314, %v1310
        %v1399 = vpack.c.b16 %v1315, %v1311
        %v1400 = vpack.c.b16 %v1316, %v1312
        %v1401 = vpack.c.b16 %v1317, %v1313
        %v1402 = vpack.c.b16 %v1322, %v1318
        %v1403 = vpack.c.b16 %v1323, %v1319
        %v1404 = vpack.c.b16 %v1324, %v1320
        %v1405 = vpack.c.b16 %v1325, %v1321
        %v1406 = vpack.c.b16 %v1330, %v1326
        %v1407 = vpack.c.b16 %v1331, %v1327
        %v1408 = vpack.c.b16 %v1332, %v1328
        %v1409 = vpack.c.b16 %v1333, %v1329
        %v1410 = vpack.c.b16 %v1338, %v1334
        %v1411 = vpack.c.b16 %v1339, %v1335
        %v1412 = vpack.c.b16 %v1340, %v1336
        %v1413 = vpack.c.b16 %v1341, %v1337
        %v1414 = vpack.c.b16 %v1346, %v1342
        %v1415 = vpack.c.b16 %v1347, %v1343
        %v1416 = vpack.c.b16 %v1348, %v1344
        %v1417 = vpack.c.b16 %v1349, %v1345
        %v1418 = vpack.c.b16 %v1354, %v1350
        %v1419 = vpack.c.b16 %v1355, %v1351
        %v1420 = vpack.c.b16 %v1356, %v1352
        %v1421 = vpack.c.b16 %v1357, %v1353
        %1486 = vmatpush.bf16.msra.mxu0 %v1386
        %1487 = vmatpush.bf16.msra.mxu0 %v1382
        %1488 = vmatpush.bf16.msra.mxu0 %v1378
        %1489 = vmatpush.bf16.msra.mxu0 %v1374
        %1490 = vmatpush.bf16.msra.mxu0 %v1370
        %1491 = vmatpush.bf16.msra.mxu0 %v1366
        %1492 = vmatpush.bf16.msra.mxu0 %v1362
        %1493 = vmatpush.bf16.msra.mxu0 %v1358
        %1494 = vmatmul.bf16.gmra.mxu0 %v824
        %v1495 = vpop.f32.mrf.mxu0
        %v1496 = vadd.f32 %v1124, %v1495
        %v1497 = vpop.f32.mrf.mxu0
        %1498 = vdwg.mxu0
        %1499 = vmatpush.bf16.msra.mxu0 %v1418
        %1500 = vmatpush.bf16.msra.mxu0 %v1414
        %1501 = vmatpush.bf16.msra.mxu0 %v1410
        %1502 = vmatpush.bf16.msra.mxu0 %v1406
        %1503 = vmatpush.bf16.msra.mxu0 %v1402
        %1504 = vmatpush.bf16.msra.mxu0 %v1398
        %1505 = vmatpush.bf16.msra.mxu0 %v1394
        %1506 = vmatpush.bf16.msra.mxu0 %v1390
        %1507 = vmatmul.bf16.gmra.mxu0 %v398
        %v1508 = vpop.f32.mrf.mxu0
        %v1509 = vadd.f32 %v1496, %v1508
        %v1510 = vpop.f32.mrf.mxu0
        %1511 = vdwg.mxu0
        %1512 = vmatpush.bf16.msra.mxu0 %v1387
        %1513 = vmatpush.bf16.msra.mxu0 %v1383
        %1514 = vmatpush.bf16.msra.mxu0 %v1379
        %1515 = vmatpush.bf16.msra.mxu0 %v1375
        %1516 = vmatpush.bf16.msra.mxu0 %v1371
        %1517 = vmatpush.bf16.msra.mxu0 %v1367
        %1518 = vmatpush.bf16.msra.mxu0 %v1363
        %1519 = vmatpush.bf16.msra.mxu0 %v1359
        %1520 = vmatmul.bf16.gmra.mxu0 %v824
        %v1521 = vpop.f32.mrf.mxu0
        %v1522 = vadd.f32 %v1137, %v1521
        %v1523 = vpop.f32.mrf.mxu0
        %1524 = vdwg.mxu0
        %1525 = vmatpush.bf16.msra.mxu0 %v1419
        %1526 = vmatpush.bf16.msra.mxu0 %v1415
        %1527 = vmatpush.bf16.msra.mxu0 %v1411
        %1528 = vmatpush.bf16.msra.mxu0 %v1407
        %1529 = vmatpush.bf16.msra.mxu0 %v1403
        %1530 = vmatpush.bf16.msra.mxu0 %v1399
        %1531 = vmatpush.bf16.msra.mxu0 %v1395
        %1532 = vmatpush.bf16.msra.mxu0 %v1391
        %1533 = vmatmul.bf16.gmra.mxu0 %v398
        %v1534 = vpop.f32.mrf.mxu0
        %v1535 = vadd.f32 %v1522, %v1534
        %v1536 = vpop.f32.mrf.mxu0
        %1537 = vdwg.mxu0
        %1538 = vmatpush.bf16.msra.mxu0 %v1388
        %1539 = vmatpush.bf16.msra.mxu0 %v1384
        %1540 = vmatpush.bf16.msra.mxu0 %v1380
        %1541 = vmatpush.bf16.msra.mxu0 %v1376
        %1542 = vmatpush.bf16.msra.mxu0 %v1372
        %1543 = vmatpush.bf16.msra.mxu0 %v1368
        %1544 = vmatpush.bf16.msra.mxu0 %v1364
        %1545 = vmatpush.bf16.msra.mxu0 %v1360
        %1546 = vmatmul.bf16.gmra.mxu0 %v824
        %v1547 = vpop.f32.mrf.mxu0
        %v1548 = vadd.f32 %v1150, %v1547
        %v1549 = vpop.f32.mrf.mxu0
        %1550 = vdwg.mxu0
        %1551 = vmatpush.bf16.msra.mxu0 %v1420
        %1552 = vmatpush.bf16.msra.mxu0 %v1416
        %1553 = vmatpush.bf16.msra.mxu0 %v1412
        %1554 = vmatpush.bf16.msra.mxu0 %v1408
        %1555 = vmatpush.bf16.msra.mxu0 %v1404
        %1556 = vmatpush.bf16.msra.mxu0 %v1400
        %1557 = vmatpush.bf16.msra.mxu0 %v1396
        %1558 = vmatpush.bf16.msra.mxu0 %v1392
        %1559 = vmatmul.bf16.gmra.mxu0 %v398
        %v1560 = vpop.f32.mrf.mxu0
        %v1561 = vadd.f32 %v1548, %v1560
        %v1562 = vpop.f32.mrf.mxu0
        %1563 = vdwg.mxu0
        %1564 = vmatpush.bf16.msra.mxu0 %v1389
        %1565 = vmatpush.bf16.msra.mxu0 %v1385
        %1566 = vmatpush.bf16.msra.mxu0 %v1381
        %1567 = vmatpush.bf16.msra.mxu0 %v1377
        %1568 = vmatpush.bf16.msra.mxu0 %v1373
        %1569 = vmatpush.bf16.msra.mxu0 %v1369
        %1570 = vmatpush.bf16.msra.mxu0 %v1365
        %1571 = vmatpush.bf16.msra.mxu0 %v1361
        %1572 = vmatmul.bf16.gmra.mxu0 %v824
        %v1573 = vpop.f32.mrf.mxu0
        %v1574 = vadd.f32 %v1163, %v1573
        %v1575 = vpop.f32.mrf.mxu0
        %1576 = vdwg.mxu0
        %1577 = vmatpush.bf16.msra.mxu0 %v1421
        %1578 = vmatpush.bf16.msra.mxu0 %v1417
        %1579 = vmatpush.bf16.msra.mxu0 %v1413
        %1580 = vmatpush.bf16.msra.mxu0 %v1409
        %1581 = vmatpush.bf16.msra.mxu0 %v1405
        %1582 = vmatpush.bf16.msra.mxu0 %v1401
        %1583 = vmatpush.bf16.msra.mxu0 %v1397
        %1584 = vmatpush.bf16.msra.mxu0 %v1393
        %1585 = vmatmul.bf16.gmra.mxu0 %v398
        %v1586 = vpop.f32.mrf.mxu0
        %v1587 = vadd.f32 %v1574, %v1586
        %v1588 = vpop.f32.mrf.mxu0
        %1589 = vdwg.mxu0
        %v1591 = vperm.slane %v379, 0
        %v1592 = vperm.slane %v379, 1
        %v1593 = vperm.slane %v379, 2
        %v1594 = vperm.slane %v379, 3
        %v1599 = vadd.f32 %v1509, %v1591
        %v1600 = vadd.f32 %v1535, %v1592
        %v1601 = vadd.f32 %v1561, %v1593
        %v1602 = vadd.f32 %v1587, %v1594
        %v1603 = vxor.u32 %v1599, 2147483648
        %v1604 = vmul.f32 %v1603, 1.442695
        %v1605 = vpow.pop %v1604
        %v1606 = vadd.f32 %v1605, 1.0
        %v1607 = vrcp.pop %v1606
        %v1608 = vmul.f32 %v1606, %v1607
        %v1609 = vsub.f32 1.0, %v1608
        %v1610 = vmul.f32 %v1607, %v1609
        %v1611 = vadd.f32 %v1607, %v1610
        %vm1612 = vweird.f32 %v1606
        %vm1613 = vweird.f32 %v1607
        %vm1614 = vmor %vm1612, %vm1613
        %v1615 = vsel %vm1614, %v1607, %v1611
        %v1616 = vand.u32 2147483647, %v1606
        %vm1617 = vcmp.eq.f32.partialorder %v1616, 8.507059e+37
        %v1618 = vand.u32 %v1606, 2147483648
        %v1619 = vor.u32 1.1754944e-38, %v1618
        %v1620 = vsel %vm1617, %v1619, %v1615
        %v1621 = vmul.f32 1.0, %v1620
        %v1622 = vxor.u32 %v1600, 2147483648
        %v1623 = vmul.f32 %v1622, 1.442695
        %v1624 = vpow.pop %v1623
        %v1625 = vadd.f32 %v1624, 1.0
        %v1626 = vrcp.pop %v1625
        %v1627 = vmul.f32 %v1625, %v1626
        %v1628 = vsub.f32 1.0, %v1627
        %v1629 = vmul.f32 %v1626, %v1628
        %v1630 = vadd.f32 %v1626, %v1629
        %vm1631 = vweird.f32 %v1625
        %vm1632 = vweird.f32 %v1626
        %vm1633 = vmor %vm1631, %vm1632
        %v1634 = vsel %vm1633, %v1626, %v1630
        %v1635 = vand.u32 2147483647, %v1625
        %vm1636 = vcmp.eq.f32.partialorder %v1635, 8.507059e+37
        %v1637 = vand.u32 %v1625, 2147483648
        %v1638 = vor.u32 1.1754944e-38, %v1637
        %v1639 = vsel %vm1636, %v1638, %v1634
        %v1640 = vmul.f32 1.0, %v1639
        %v1641 = vtanh.pop %v1601
        %v1642 = vxor.u32 %v1602, 2147483648
        %v1643 = vmul.f32 %v1642, 1.442695
        %v1644 = vpow.pop %v1643
        %v1645 = vadd.f32 %v1644, 1.0
        %v1646 = vrcp.pop %v1645
        %v1647 = vmul.f32 %v1645, %v1646
        %v1648 = vsub.f32 1.0, %v1647
        %v1649 = vmul.f32 %v1646, %v1648
        %v1650 = vadd.f32 %v1646, %v1649
        %vm1651 = vweird.f32 %v1645
        %vm1652 = vweird.f32 %v1646
        %vm1653 = vmor %vm1651, %vm1652
        %v1654 = vsel %vm1653, %v1646, %v1650
        %v1655 = vand.u32 2147483647, %v1645
        %vm1656 = vcmp.eq.f32.partialorder %v1655, 8.507059e+37
        %v1657 = vand.u32 %v1645, 2147483648
        %v1658 = vor.u32 1.1754944e-38, %v1657
        %v1659 = vsel %vm1656, %v1658, %v1654
        %v1660 = vmul.f32 1.0, %v1659
        %v1661 = vld [vmem:[#allocation3] sm:$0xff]
        %v1662 = vmul.f32 %v1640, %v1661
        %v1663 = vmul.f32 %v1621, %v1641
        %v1664 = vadd.f32 %v1662, %v1663
        %v1665 = vtanh.pop %v1664
        %v1666 = vmul.f32 %v1660, %v1665
        %v1667 = vpack.c.bf16 %v1666, %v1666
        %v1668 = vld [vmem:[#allocation9] sm:$0xf]
        %v1669 = vld [vmem:[#allocation9 + $0x4] sm:$0xf]
        %v1670 = vld [vmem:[#allocation9 + $0x8] sm:$0xf]
        %v1671 = vld [vmem:[#allocation9 + $0xc] sm:$0xf]
        %v1672 = vld [vmem:[#allocation9 + $0x10] sm:$0xf]
        %v1673 = vld [vmem:[#allocation9 + $0x14] sm:$0xf]
        %v1674 = vld [vmem:[#allocation9 + $0x18] sm:$0xf]
        %v1675 = vld [vmem:[#allocation9 + $0x1c] sm:$0xf]
        %v1676 = vld [vmem:[#allocation9 + $0x20] sm:$0xf]
        %v1677 = vld [vmem:[#allocation9 + $0x24] sm:$0xf]
        %v1678 = vld [vmem:[#allocation9 + $0x28] sm:$0xf]
        %v1679 = vld [vmem:[#allocation9 + $0x2c] sm:$0xf]
        %v1680 = vld [vmem:[#allocation9 + $0x30] sm:$0xf]
        %v1681 = vld [vmem:[#allocation9 + $0x34] sm:$0xf]
        %v1682 = vld [vmem:[#allocation9 + $0x38] sm:$0xf]
        %v1683 = vld [vmem:[#allocation9 + $0x3c] sm:$0xf]
        %v1685 = vperm.slane %v380, 0
        %v1703 = vunpack.c.l.b16 %v1668
        %v1704 = vunpack.c.l.b16 %v1669
        %v1705 = vunpack.c.l.b16 %v1670
        %v1706 = vunpack.c.l.b16 %v1671
        %v1707 = vunpack.c.l.b16 %v1672
        %v1708 = vunpack.c.l.b16 %v1673
        %v1709 = vunpack.c.l.b16 %v1674
        %v1710 = vunpack.c.l.b16 %v1675
        %v1711 = vunpack.c.l.b16 %v1676
        %v1712 = vunpack.c.l.b16 %v1677
        %v1713 = vunpack.c.l.b16 %v1678
        %v1714 = vunpack.c.l.b16 %v1679
        %v1715 = vunpack.c.l.b16 %v1680
        %v1716 = vunpack.c.l.b16 %v1681
        %v1717 = vunpack.c.l.b16 %v1682
        %v1718 = vunpack.c.l.b16 %v1683
        %v1719 = vpack.c.b16 %v1704, %v1703
        %v1720 = vpack.c.b16 %v1706, %v1705
        %v1721 = vpack.c.b16 %v1708, %v1707
        %v1722 = vpack.c.b16 %v1710, %v1709
        %v1723 = vpack.c.b16 %v1712, %v1711
        %v1724 = vpack.c.b16 %v1714, %v1713
        %v1725 = vpack.c.b16 %v1716, %v1715
        %v1726 = vpack.c.b16 %v1718, %v1717
        %1735 = vmatpush.bf16.msra.mxu0 %v1726
        %1736 = vmatpush.bf16.msra.mxu0 %v1725
        %1737 = vmatpush.bf16.msra.mxu0 %v1724
        %1738 = vmatpush.bf16.msra.mxu0 %v1723
        %1739 = vmatpush.bf16.msra.mxu0 %v1722
        %1740 = vmatpush.bf16.msra.mxu0 %v1721
        %1741 = vmatpush.bf16.msra.mxu0 %v1720
        %1742 = vmatpush.bf16.msra.mxu0 %v1719
        %1743 = vmatmul.bf16.gmra.mxu0 %v1667
        %v1744 = vpop.f32.mrf.mxu0
        %v1745 = vadd.f32 %v1685, %v1744
        %v1746 = vpop.f32.mrf.mxu0
        %1747 = vdwg.mxu0
        %1748 = vst [vmem:[%s366] sm:$0xff] %v1745
        %1749 = vst [vmem:[#allocation2 + $0x8] sm:$0xff] %v1666
        %1750 = vst [vmem:[#allocation3] sm:$0xff] %v1664
        %v1751 = vcvt.s32.f32 %v652
        %1752 = vmax.xlane.f32.xlu0 %v1745
        %v1753 = vpop.xlane.xlu0 %1752
        %vm1754 = vcmp.eq.f32.partialorder %v1745, %v1753
        %v1755 = vsel %vm1754, %v1751, 128.0
        %1756 = vmin.xlane.f32.xlu0 %v1755
        %v1757 = vpop.xlane.xlu0 %1756
        %vm1758 = vcmp.eq.f32.partialorder %v1751, %v1757
        %v1759 = vsel %vm1758, 1, 0
        %v1760 = vcvt.s32.f32 %v1759
        %v1761 = vpack.c.bf16 %v1760, %v1760
        %v1762 = vld [vmem:[#allocation10] sm:$0xf]
        %v1763 = vld [vmem:[#allocation10 + $0x4] sm:$0xf]
        %v1764 = vld [vmem:[#allocation10 + $0x8] sm:$0xf]
        %v1765 = vld [vmem:[#allocation10 + $0xc] sm:$0xf]
        %v1766 = vld [vmem:[#allocation10 + $0x10] sm:$0xf]
        %v1767 = vld [vmem:[#allocation10 + $0x14] sm:$0xf]
        %v1768 = vld [vmem:[#allocation10 + $0x18] sm:$0xf]
        %v1769 = vld [vmem:[#allocation10 + $0x1c] sm:$0xf]
        %v1770 = vld [vmem:[#allocation10 + $0x20] sm:$0xf]
        %v1771 = vld [vmem:[#allocation10 + $0x24] sm:$0xf]
        %v1772 = vld [vmem:[#allocation10 + $0x28] sm:$0xf]
        %v1773 = vld [vmem:[#allocation10 + $0x2c] sm:$0xf]
        %v1774 = vld [vmem:[#allocation10 + $0x30] sm:$0xf]
        %v1775 = vld [vmem:[#allocation10 + $0x34] sm:$0xf]
        %v1776 = vld [vmem:[#allocation10 + $0x38] sm:$0xf]
        %v1777 = vld [vmem:[#allocation10 + $0x3c] sm:$0xf]
        %v1794 = vunpack.c.l.b16 %v1762
        %v1795 = vunpack.c.l.b16 %v1763
        %v1796 = vunpack.c.l.b16 %v1764
        %v1797 = vunpack.c.l.b16 %v1765
        %v1798 = vunpack.c.l.b16 %v1766
        %v1799 = vunpack.c.l.b16 %v1767
        %v1800 = vunpack.c.l.b16 %v1768
        %v1801 = vunpack.c.l.b16 %v1769
        %v1802 = vunpack.c.l.b16 %v1770
        %v1803 = vunpack.c.l.b16 %v1771
        %v1804 = vunpack.c.l.b16 %v1772
        %v1805 = vunpack.c.l.b16 %v1773
        %v1806 = vunpack.c.l.b16 %v1774
        %v1807 = vunpack.c.l.b16 %v1775
        %v1808 = vunpack.c.l.b16 %v1776
        %v1809 = vunpack.c.l.b16 %v1777
        %v1810 = vpack.c.b16 %v1795, %v1794
        %v1811 = vpack.c.b16 %v1797, %v1796
        %v1812 = vpack.c.b16 %v1799, %v1798
        %v1813 = vpack.c.b16 %v1801, %v1800
        %v1814 = vpack.c.b16 %v1803, %v1802
        %v1815 = vpack.c.b16 %v1805, %v1804
        %v1816 = vpack.c.b16 %v1807, %v1806
        %v1817 = vpack.c.b16 %v1809, %v1808
        %1826 = vmatpush.bf16.msra.mxu0 %v1817
        %1827 = vmatpush.bf16.msra.mxu0 %v1816
        %1828 = vmatpush.bf16.msra.mxu0 %v1815
        %1829 = vmatpush.bf16.msra.mxu0 %v1814
        %1830 = vmatpush.bf16.msra.mxu0 %v1813
        %1831 = vmatpush.bf16.msra.mxu0 %v1812
        %1832 = vmatpush.bf16.msra.mxu0 %v1811
        %1833 = vmatpush.bf16.msra.mxu0 %v1810
        %1834 = vmatmul.bf16.gmra.mxu0 %v1761
        %v1835 = vpop.f32.mrf.mxu0
        %v1836 = vadd.f32 0.0, %v1835
        %v1837 = vpop.f32.mrf.mxu0
        %1838 = vdwg.mxu0
        %1839 = vst [vmem:[#allocation2] sm:$0xff] %v1836
        %s1840 = sand.u32 %s203, 1
        %s1841 = scalar_lea.sflag [#allocation6], %s1840
        %s1842 = sand.u32 %s203, 1
        %s1843 = smul.addr %s1842, 8
        %s1844 = scalar_lea.vmem [#allocation12], %s1843
        // Predicated region
        $region69: #{_nre_forward_impl.1} parent=47 // pred_check
          %p1845 = pneg %p213
        $region70: #{_nre_forward_impl.1} parent=47 // pred_check_branch
          %1847 = sbr.rel (%p1845) target = $region72
        $region71: #{_nre_forward_impl.1} parent=47 // pred_region
          %1849 = vsyncadd %s1841, 0
          %s1850 = sadd.s32 %s28, %s29
          %s1851 = smul.addr %s1850, 8
          %s1852 = scalar_lea.hbm %s7, %s1851
          %s1854 = sshll.u32 %s1844, 4
          %s1855 = int_to_ptr.vmem [resolvable:$true] %s1854
          %s1856 = sshll.u32 %s1852, 4
          %s1857 = int_to_ptr.hbm [resolvable:$true] %s1856
          %1859 = dma.vmem_to_hbm [thread:$0]  %s1855, 128, %s1857, %s1841
        $region72: #{_nre_forward_impl.1} parent=47 // pred_fallthru
          _
      $region48: #{_nre_forward_impl.1} parent=5 // pred_fallthru
        _
      %p1860 = scmp.le.s32.totalorder 2, %s19
      // Predicated region
      $region73: #{_nre_forward_impl.1} parent=5 // pred_check
        %p1861 = pneg %p1860
      $region74: #{_nre_forward_impl.1} parent=5 // pred_check_branch
        %1863 = sbr.rel (%p1861) target = $region76
      $region75: #{_nre_forward_impl.1} parent=5 // pred_region
        %s1864 = ssub.s32 %s19, 2
        // Predicated region
        $region77: #{_nre_forward_impl.1} parent=75 // pred_check
          %p1865 = pneg %p219
        $region78: #{_nre_forward_impl.1} parent=75 // pred_check_branch
          %1867 = sbr.rel (%p1865) target = $region80
        $region79: #{_nre_forward_impl.1} parent=75 // pred_region
          %s1868 = sand.u32 %s204, 1
          %s1869 = scalar_lea.sflag [#allocation6], %s1868
          %s1870 = sand.u32 %s204, 1
          %s1871 = smul.addr %s1870, 8
          %s1872 = scalar_lea.vmem [#allocation12], %s1871
          %1874 = dma.done %s1869, 128
        $region80: #{_nre_forward_impl.1} parent=75 // pred_fallthru
          _
      $region76: #{_nre_forward_impl.1} parent=5 // pred_fallthru
        _
    $region6: #{_nre_forward_impl.1} parent=1 // loop_footer
      %s23 = sadd.s32 1, %s19
    $region7: #{_nre_forward_impl.1} parent=1 // loop_footer_branch
      %18 = sbr.rel target = $region3
    $region8: #{_nre_forward_impl.1} parent=1 // loop_exit
      _
    %1875 = vsyncpa [#allocation5], 1
    %s1876 = scalar_lea.sflag [#allocation5], 1
    %1877 = vsyncpa %s1876, 1
    %1878 = vsyncpa [#allocation8], 1
    %1879 = vsyncpa [#allocation11], 1
    %1880 = vsyncpa [#allocation6], 1
    %s1881 = scalar_lea.sflag [#allocation6], 1
    %1882 = vsyncpa %s1881, 1

</llo_original>
